<compile_context>
chip_gen: v7x
topology: tpu7x:2x2x1
jax: 0.10.0
libtpu: 0.0.40
codegen_flags: <defaults>
</compile_context>

<pallas_src>
import functools

import jax
import jax.numpy as jnp
from jax.experimental import pallas as pl
from jax.experimental.pallas import tpu as pltpu

LANE = 128        # TPU lane width: each action's atom block is padded to one full vreg row
NEG = -1e30       # additive f32 mask that drives padded atom lanes to exp() == 0


def rainbow_kernel(x_ref,
                   w1_ref, b1_ref, w2_ref, b2_ref, w3_ref, b3_ref,
                   wh_ref, bh_ref, wa_ref, ba_ref, wv_ref, bv_ref,
                   sup_ref,
                   q_ref,
                   *, out_dim: int):
    """Feature MLP -> fused dueling heads -> per-action categorical softmax -> expected Q."""
    cdt = w1_ref.dtype                       # bf16 matmul-operand dtype (f32 accumulation)
    x = x_ref[...].astype(cdt)

    # --- feature_layer: Linear(in,256)+ReLU -> Linear(256,256)+ReLU -> Linear(256,128)+ReLU
    f = jnp.maximum(
        jnp.dot(x, w1_ref[...], preferred_element_type=jnp.float32) + b1_ref[...], 0.0)
    f = jnp.maximum(
        jnp.dot(f.astype(cdt), w2_ref[...], preferred_element_type=jnp.float32) + b2_ref[...], 0.0)
    f = jnp.maximum(
        jnp.dot(f.astype(cdt), w3_ref[...], preferred_element_type=jnp.float32) + b3_ref[...], 0.0)

    # --- fused dueling hidden heads: one (128, 256) matmul; the split at lane offset 128
    #     is a tile-boundary-aligned free view.
    h = jnp.maximum(
        jnp.dot(f.astype(cdt), wh_ref[...], preferred_element_type=jnp.float32) + bh_ref[...], 0.0)
    adv_hid = h[:, :LANE].astype(cdt)
    val_hid = h[:, LANE:].astype(cdt)

    # --- output heads (lane-aligned padded layouts built once host-side)
    # advantage: (tb, out_dim*128); action a's real atoms sit in lanes [a*128, a*128+K),
    #            padded lanes are exactly 0 (zero weight columns, zero bias).
    advantage = jnp.dot(adv_hid, wa_ref[...], preferred_element_type=jnp.float32) + ba_ref[...]
    # value: (tb, 128); real atoms in lanes [0, K); padded lanes carry NEG via the f32 bias
    #        so padded atoms drop out of every per-action softmax below.
    value = jnp.dot(val_hid, wv_ref[...], preferred_element_type=jnp.float32) + bv_ref[...]

    # advantage.mean(dim=1, keepdim=True) over the action axis; padded lanes stay exactly 0.
    adv_mean = advantage[:, :LANE]
    for a in range(1, out_dim):
        adv_mean = adv_mean + advantage[:, a * LANE:(a + 1) * LANE]
    adv_mean = adv_mean * (1.0 / out_dim)

    # per-action categorical softmax + exact-f32 expected value (no big zero-padded
    # support matmul, no (tb, A*128) concatenate -> no extra VMEM temporary).
    tb = x_ref.shape[0]
    sup = sup_ref[...]                                                   # (1, 128); padded lanes 0
    lane_ids = jax.lax.broadcasted_iota(jnp.int32, (tb, LANE), 1)
    q_out = jnp.zeros((tb, LANE), jnp.float32)
    for a in range(out_dim):
        q_atoms = value + advantage[:, a * LANE:(a + 1) * LANE] - adv_mean   # (tb, 128) f32
        m = jnp.max(q_atoms, axis=-1, keepdims=True)                         # padded lanes = NEG
        e = jnp.exp(q_atoms - m)                                             # padded lanes -> 0
        dist = e / jnp.sum(e, axis=-1, keepdims=True)                        # exact f32 softmax
        dist = jnp.maximum(dist, 0.001)                                      # .clamp(min=0.001)
        # expected Q for action a; padded lanes contribute 0 because sup is 0 there.
        q_a = jnp.sum(dist * sup, axis=-1, keepdims=True)                    # (tb, 1) f32
        q_out = jnp.where(lane_ids == a, q_a, q_out)                         # place at lane a
    q_ref[...] = q_out                                                       # lane-dense store


def pack_params(params, support, *, out_dim, atom_size, compute_dtype=jnp.bfloat16):
    """One-time repack of PyTorch-shaped (pre-transposed) params into the kernel layout.

    Hoisted out of the per-step path: call once, reuse the packed tuple every forward.
    Matmul weights go to `compute_dtype` (bf16); biases / masks / support stay f32.
    """
    (w1, b1, w2, b2, w3, b3, wah, bah, wa, ba, wvh, bvh, wv, bv) = params
    A, K = out_dim, atom_size
    f32 = jnp.float32
    cdt = compute_dtype

    # 1) fuse the two dueling hidden heads into one (128, 256) weight / (1, 256) bias.
    wh = jnp.concatenate([wah, wvh], axis=1)
    bh = jnp.concatenate([bah, bvh], axis=1)

    # 2) lane-align the advantage head: atoms of action a start at lane a*128.
    cols = (jnp.arange(A)[:, None] * LANE + jnp.arange(K)[None, :]).reshape(-1)   # (A*K,)
    wa_pad = jnp.zeros((wa.shape[0], A * LANE), f32).at[:, cols].set(wa.astype(f32))
    ba_pad = jnp.zeros((1, A * LANE), f32).at[:, cols].set(ba.astype(f32))

    # 3) pad the value head to a full 128-lane block; padded bias lanes get the softmax mask.
    wv_pad = jnp.zeros((wv.shape[0], LANE), f32).at[:, :K].set(wv.astype(f32))
    bv_pad = jnp.full((1, LANE), NEG, f32).at[:, :K].set(bv.astype(f32))

    # 4) lane-pad the support row (zeros in padded lanes -> clamped padded dist contributes 0).
    sup_pad = jnp.zeros((1, LANE), f32).at[0, :K].set(support.reshape(-1).astype(f32))

    return (w1.astype(cdt), b1.astype(f32),
            w2.astype(cdt), b2.astype(f32),
            w3.astype(cdt), b3.astype(f32),
            wh.astype(cdt), bh.astype(f32),
            wa_pad.astype(cdt), ba_pad,
            wv_pad.astype(cdt), bv_pad,
            sup_pad)


def rainbow_dqn_forward(x, packed, *, out_dim, block_b=512):
    """RainbowDQN forward via a batch-tiled Pallas kernel on pre-packed weights."""
    B, in_dim = x.shape
    f32 = jnp.float32

    # Batch tiling: sublane-aligned, capped at `block_b` (keeps (tb, A*128) temporaries
    # well inside v7x's 32 MiB scoped VMEM and v5e's 16 MiB default), and split into
    # >= 2 tiles when the batch allows so the "parallel" grid shards across v7x's 2 TCs.
    b8 = ((B + 7) // 8) * 8
    tb = min(block_b, b8)
    if b8 >= 16:
        tb = min(tb, ((pl.cdiv(b8, 2) + 7) // 8) * 8)
    Bp = ((B + tb - 1) // tb) * tb
    if Bp != B:
        x = jnp.pad(x, ((0, Bp - B), (0, 0)))
    grid = (Bp // tb,)

    # constant index_maps -> weights are loaded once and stay VMEM-resident across batch tiles.
    w_specs = [pl.BlockSpec(w.shape, lambda i: (0, 0)) for w in packed]

    A = out_dim
    flops = 2 * Bp * (in_dim * 256 + 256 * 256 + 256 * 128 + 128 * 256
                      + 128 * (A * LANE) + 128 * LANE)
    bytes_accessed = int(4 * x.size + sum(int(w.size) * w.dtype.itemsize for w in packed)
                         + 4 * Bp * LANE)
    cost = pl.CostEstimate(flops=flops, transcendentals=Bp * A * LANE,
                           bytes_accessed=bytes_accessed)

    kernel = functools.partial(rainbow_kernel, out_dim=out_dim)
    q_pad = pl.pallas_call(
        kernel,
        out_shape=jax.ShapeDtypeStruct((Bp, LANE), f32),
        grid=grid,
        in_specs=[pl.BlockSpec((tb, in_dim), lambda i: (i, 0))] + w_specs,
        out_specs=pl.BlockSpec((tb, LANE), lambda i: (i, 0)),
        compiler_params=pltpu.CompilerParams(dimension_semantics=("parallel",)),
        cost_estimate=cost,
    )(x, *packed)
    return q_pad[:B, :out_dim]


def make_params(key, in_dim, out_dim, atom_size):
    """Deterministic synthetic parameters (shapes match the PyTorch module, transposed)."""
    def dense(k, fan_in, fan_out, scale):
        kw, kb = jax.random.split(k)
        w = jax.random.normal(kw, (fan_in, fan_out), jnp.float32) * scale
        b = jax.random.normal(kb, (1, fan_out), jnp.float32) * 0.01
        return w, b

    keys = jax.random.split(key, 7)
    w1, b1 = dense(keys[0], in_dim, 256, (2.0 / in_dim) ** 0.5)              # feature linear1
    w2, b2 = dense(keys[1], 256, 256, (2.0 / 256) ** 0.5)                    # feature linear2
    w3, b3 = dense(keys[2], 256, 128, (2.0 / 256) ** 0.5)                    # feature linear3
    # NoisyLinear heads: effective weight = mu + sigma*eps folded deterministically.
    wah, bah = dense(keys[3], 128, 128, (1.0 / 128) ** 0.5)                  # advantage_hidden
    wa, ba = dense(keys[4], 128, out_dim * atom_size, (1.0 / 128) ** 0.5)    # advantage_layer
    wvh, bvh = dense(keys[5], 128, 128, (1.0 / 128) ** 0.5)                  # value_hidden
    wv, bv = dense(keys[6], 128, atom_size, (1.0 / 128) ** 0.5)              # value_layer
    return (w1, b1, w2, b2, w3, b3, wah, bah, wa, ba, wvh, bvh, wv, bv)


def reference_forward(x, params, support, *, out_dim, atom_size, matmul_dtype=jnp.float32):
    """Pure-JAX reference mirroring the PyTorch forward().

    With matmul_dtype=bfloat16 it applies the same operand casts as the kernel
    (precision-matched check); with float32 it is the PyTorch-style f32 reference.
    """
    (w1, b1, w2, b2, w3, b3, wah, bah, wa, ba, wvh, bvh, wv, bv) = params
    dt = matmul_dtype

    def dot(a, w):
        return jnp.dot(a.astype(dt), w.astype(dt), preferred_element_type=jnp.float32)

    f = jax.nn.relu(dot(x, w1) + b1)
    f = jax.nn.relu(dot(f, w2) + b2)
    f = jax.nn.relu(dot(f, w3) + b3)
    adv_hid = jax.nn.relu(dot(f, wah) + bah)
    val_hid = jax.nn.relu(dot(f, wvh) + bvh)
    advantage = (dot(adv_hid, wa) + ba).reshape(-1, out_dim, atom_size)
    value = (dot(val_hid, wv) + bv).reshape(-1, 1, atom_size)
    q_atoms = value + advantage - advantage.mean(axis=1, keepdims=True)
    dist = jax.nn.softmax(q_atoms, axis=-1)
    dist = jnp.maximum(dist, 0.001)                      # .clamp(min=0.001)
    return jnp.sum(dist * support.reshape(1, 1, atom_size), axis=2)


if __name__ == "__main__":
    B, IN_DIM, OUT_DIM, ATOM_SIZE = 8, 32, 4, 16

    key = jax.random.PRNGKey(0)
    kx, kp = jax.random.split(key)
    x = jax.random.normal(kx, (B, IN_DIM), jnp.float32)
    params = make_params(kp, IN_DIM, OUT_DIM, ATOM_SIZE)
    support = jnp.linspace(0.0, 10.0, ATOM_SIZE, dtype=jnp.float32).reshape(1, ATOM_SIZE)

    # Weight repacking happens ONCE (hoisted out of the per-step path).
    packed = pack_params(params, support, out_dim=OUT_DIM, atom_size=ATOM_SIZE)

    q = rainbow_dqn_forward(x, packed, out_dim=OUT_DIM)
    q = jax.block_until_ready(q)
    assert q.shape == (B, OUT_DIM)

    # (a) layout/plumbing check against a precision-matched (bf16-operand) reference.
    q_ref_matched = reference_forward(x, params, support, out_dim=OUT_DIM,
                                      atom_size=ATOM_SIZE, matmul_dtype=jnp.bfloat16)
    assert jnp.allclose(q, q_ref_matched, atol=2e-3, rtol=2e-3), \
        "Pallas kernel mismatch vs precision-matched JAX reference"

    # (b) semantics check against the f32 (PyTorch-like) reference; the tolerance covers
    #     bf16 matmul-operand rounding (accumulation stays f32).
    q_ref_f32 = reference_forward(x, params, support, out_dim=OUT_DIM,
                                  atom_size=ATOM_SIZE, matmul_dtype=jnp.float32)
    assert jnp.allclose(q, q_ref_f32, atol=1e-1, rtol=5e-2), \
        "Pallas kernel deviates from f32 reference beyond bf16 tolerance"

    print("KERNEL_OK")
</pallas_src>

<mosaic_0001>
module attributes {stable_mosaic.version = 11 : i64} {
  func.func @rainbow_kernel(%arg0: i32, %arg1: memref<8x32xf32, #tpu.memory_space<vmem>>, %arg2: memref<32x256xbf16, #tpu.memory_space<vmem>>, %arg3: memref<1x256xf32, #tpu.memory_space<vmem>>, %arg4: memref<256x256xbf16, #tpu.memory_space<vmem>>, %arg5: memref<1x256xf32, #tpu.memory_space<vmem>>, %arg6: memref<256x128xbf16, #tpu.memory_space<vmem>>, %arg7: memref<1x128xf32, #tpu.memory_space<vmem>>, %arg8: memref<128x256xbf16, #tpu.memory_space<vmem>>, %arg9: memref<1x256xf32, #tpu.memory_space<vmem>>, %arg10: memref<128x512xbf16, #tpu.memory_space<vmem>>, %arg11: memref<1x512xf32, #tpu.memory_space<vmem>>, %arg12: memref<128x128xbf16, #tpu.memory_space<vmem>>, %arg13: memref<1x128xf32, #tpu.memory_space<vmem>>, %arg14: memref<1x128xf32, #tpu.memory_space<vmem>>, %arg15: memref<8x128xf32, #tpu.memory_space<vmem>>) attributes {dimension_semantics = [#tpu.dimension_semantics<parallel>], iteration_bounds = array<i64: 1>, scalar_prefetch = 0 : i64, scratch_operands = 0 : i64, tpu.core_type = #tpu.core_type<tc>, window_params = [{transform_indices = @transform_0, window_bounds = array<i64: 8, 32>}, {pipeline_mode = #tpu.pipeline_mode<synchronous>, transform_indices = @transform_1, window_bounds = array<i64: 32, 256>}, {pipeline_mode = #tpu.pipeline_mode<synchronous>, transform_indices = @transform_2, window_bounds = array<i64: 1, 256>}, {pipeline_mode = #tpu.pipeline_mode<synchronous>, transform_indices = @transform_3, window_bounds = array<i64: 256, 256>}, {pipeline_mode = #tpu.pipeline_mode<synchronous>, transform_indices = @transform_4, window_bounds = array<i64: 1, 256>}, {pipeline_mode = #tpu.pipeline_mode<synchronous>, transform_indices = @transform_5, window_bounds = array<i64: 256, 128>}, {pipeline_mode = #tpu.pipeline_mode<synchronous>, transform_indices = @transform_6, window_bounds = array<i64: 1, 128>}, {pipeline_mode = #tpu.pipeline_mode<synchronous>, transform_indices = @transform_7, window_bounds = array<i64: 128, 256>}, {pipeline_mode = #tpu.pipeline_mode<synchronous>, transform_indices = @transform_8, window_bounds = array<i64: 1, 256>}, {pipeline_mode = #tpu.pipeline_mode<synchronous>, transform_indices = @transform_9, window_bounds = array<i64: 128, 512>}, {pipeline_mode = #tpu.pipeline_mode<synchronous>, transform_indices = @transform_10, window_bounds = array<i64: 1, 512>}, {pipeline_mode = #tpu.pipeline_mode<synchronous>, transform_indices = @transform_11, window_bounds = array<i64: 128, 128>}, {pipeline_mode = #tpu.pipeline_mode<synchronous>, transform_indices = @transform_12, window_bounds = array<i64: 1, 128>}, {pipeline_mode = #tpu.pipeline_mode<synchronous>, transform_indices = @transform_13, window_bounds = array<i64: 1, 128>}, {transform_indices = @transform_14, window_bounds = array<i64: 8, 128>}]} {
    %c0 = arith.constant 0 : index
    %c0_0 = arith.constant 0 : index
    %0 = vector.load %arg1[%c0, %c0_0] : memref<8x32xf32, #tpu.memory_space<vmem>>, vector<8x32xf32>
    %1 = arith.truncf %0 : vector<8x32xf32> to vector<8x32xbf16>
    %c0_1 = arith.constant 0 : index
    %c0_2 = arith.constant 0 : index
    %2 = vector.load %arg2[%c0_1, %c0_2] : memref<32x256xbf16, #tpu.memory_space<vmem>>, vector<32x256xbf16>
    %cst = arith.constant dense<0.000000e+00> : vector<8x256xf32>
    %3 = tpu.matmul %1, %2, %cst {dimension_numbers = #tpu.dot_dimension_numbers<[1], [0], [0], [1], [0, 0, 1, 1], [], []>} : vector<8x32xbf16>, vector<32x256xbf16>, vector<8x256xf32> -> vector<8x256xf32>
    %c0_3 = arith.constant 0 : index
    %c0_4 = arith.constant 0 : index
    %4 = vector.load %arg3[%c0_3, %c0_4] : memref<1x256xf32, #tpu.memory_space<vmem>>, vector<1x256xf32>
    %5 = vector.broadcast %4 : vector<1x256xf32> to vector<8x256xf32>
    %6 = arith.addf %3, %5 : vector<8x256xf32>
    %cst_5 = arith.constant 0.000000e+00 : f32
    %7 = vector.broadcast %cst_5 : f32 to vector<8x256xf32>
    %8 = arith.maximumf %6, %7 : vector<8x256xf32>
    %9 = arith.truncf %8 : vector<8x256xf32> to vector<8x256xbf16>
    %c0_6 = arith.constant 0 : index
    %c0_7 = arith.constant 0 : index
    %10 = vector.load %arg4[%c0_6, %c0_7] : memref<256x256xbf16, #tpu.memory_space<vmem>>, vector<256x256xbf16>
    %cst_8 = arith.constant dense<0.000000e+00> : vector<8x256xf32>
    %11 = tpu.matmul %9, %10, %cst_8 {dimension_numbers = #tpu.dot_dimension_numbers<[1], [0], [0], [1], [0, 0, 1, 1], [], []>} : vector<8x256xbf16>, vector<256x256xbf16>, vector<8x256xf32> -> vector<8x256xf32>
    %c0_9 = arith.constant 0 : index
    %c0_10 = arith.constant 0 : index
    %12 = vector.load %arg5[%c0_9, %c0_10] : memref<1x256xf32, #tpu.memory_space<vmem>>, vector<1x256xf32>
    %13 = vector.broadcast %12 : vector<1x256xf32> to vector<8x256xf32>
    %14 = arith.addf %11, %13 : vector<8x256xf32>
    %cst_11 = arith.constant 0.000000e+00 : f32
    %15 = vector.broadcast %cst_11 : f32 to vector<8x256xf32>
    %16 = arith.maximumf %14, %15 : vector<8x256xf32>
    %17 = arith.truncf %16 : vector<8x256xf32> to vector<8x256xbf16>
    %c0_12 = arith.constant 0 : index
    %c0_13 = arith.constant 0 : index
    %18 = vector.load %arg6[%c0_12, %c0_13] : memref<256x128xbf16, #tpu.memory_space<vmem>>, vector<256x128xbf16>
    %cst_14 = arith.constant dense<0.000000e+00> : vector<8x128xf32>
    %19 = tpu.matmul %17, %18, %cst_14 {dimension_numbers = #tpu.dot_dimension_numbers<[1], [0], [0], [1], [0, 0, 1, 1], [], []>} : vector<8x256xbf16>, vector<256x128xbf16>, vector<8x128xf32> -> vector<8x128xf32>
    %c0_15 = arith.constant 0 : index
    %c0_16 = arith.constant 0 : index
    %20 = vector.load %arg7[%c0_15, %c0_16] : memref<1x128xf32, #tpu.memory_space<vmem>>, vector<1x128xf32>
    %21 = vector.broadcast %20 : vector<1x128xf32> to vector<8x128xf32>
    %22 = arith.addf %19, %21 : vector<8x128xf32>
    %cst_17 = arith.constant 0.000000e+00 : f32
    %23 = vector.broadcast %cst_17 : f32 to vector<8x128xf32>
    %24 = arith.maximumf %22, %23 : vector<8x128xf32>
    %25 = arith.truncf %24 : vector<8x128xf32> to vector<8x128xbf16>
    %c0_18 = arith.constant 0 : index
    %c0_19 = arith.constant 0 : index
    %26 = vector.load %arg8[%c0_18, %c0_19] : memref<128x256xbf16, #tpu.memory_space<vmem>>, vector<128x256xbf16>
    %cst_20 = arith.constant dense<0.000000e+00> : vector<8x256xf32>
    %27 = tpu.matmul %25, %26, %cst_20 {dimension_numbers = #tpu.dot_dimension_numbers<[1], [0], [0], [1], [0, 0, 1, 1], [], []>} : vector<8x128xbf16>, vector<128x256xbf16>, vector<8x256xf32> -> vector<8x256xf32>
    %c0_21 = arith.constant 0 : index
    %c0_22 = arith.constant 0 : index
    %28 = vector.load %arg9[%c0_21, %c0_22] : memref<1x256xf32, #tpu.memory_space<vmem>>, vector<1x256xf32>
    %29 = vector.broadcast %28 : vector<1x256xf32> to vector<8x256xf32>
    %30 = arith.addf %27, %29 : vector<8x256xf32>
    %cst_23 = arith.constant 0.000000e+00 : f32
    %31 = vector.broadcast %cst_23 : f32 to vector<8x256xf32>
    %32 = arith.maximumf %30, %31 : vector<8x256xf32>
    %33 = vector.extract_strided_slice %32 {offsets = [0, 0], sizes = [8, 128], strides = [1, 1]} : vector<8x256xf32> to vector<8x128xf32>
    %34 = arith.truncf %33 : vector<8x128xf32> to vector<8x128xbf16>
    %35 = vector.extract_strided_slice %32 {offsets = [0, 128], sizes = [8, 128], strides = [1, 1]} : vector<8x256xf32> to vector<8x128xf32>
    %36 = arith.truncf %35 : vector<8x128xf32> to vector<8x128xbf16>
    %c0_24 = arith.constant 0 : index
    %c0_25 = arith.constant 0 : index
    %37 = vector.load %arg10[%c0_24, %c0_25] : memref<128x512xbf16, #tpu.memory_space<vmem>>, vector<128x512xbf16>
    %cst_26 = arith.constant dense<0.000000e+00> : vector<8x512xf32>
    %38 = tpu.matmul %34, %37, %cst_26 {dimension_numbers = #tpu.dot_dimension_numbers<[1], [0], [0], [1], [0, 0, 1, 1], [], []>} : vector<8x128xbf16>, vector<128x512xbf16>, vector<8x512xf32> -> vector<8x512xf32>
    %c0_27 = arith.constant 0 : index
    %c0_28 = arith.constant 0 : index
    %39 = vector.load %arg11[%c0_27, %c0_28] : memref<1x512xf32, #tpu.memory_space<vmem>>, vector<1x512xf32>
    %40 = vector.broadcast %39 : vector<1x512xf32> to vector<8x512xf32>
    %41 = arith.addf %38, %40 : vector<8x512xf32>
    %c0_29 = arith.constant 0 : index
    %c0_30 = arith.constant 0 : index
    %42 = vector.load %arg12[%c0_29, %c0_30] : memref<128x128xbf16, #tpu.memory_space<vmem>>, vector<128x128xbf16>
    %cst_31 = arith.constant dense<0.000000e+00> : vector<8x128xf32>
    %43 = tpu.matmul %36, %42, %cst_31 {dimension_numbers = #tpu.dot_dimension_numbers<[1], [0], [0], [1], [0, 0, 1, 1], [], []>} : vector<8x128xbf16>, vector<128x128xbf16>, vector<8x128xf32> -> vector<8x128xf32>
    %c0_32 = arith.constant 0 : index
    %c0_33 = arith.constant 0 : index
    %44 = vector.load %arg13[%c0_32, %c0_33] : memref<1x128xf32, #tpu.memory_space<vmem>>, vector<1x128xf32>
    %45 = vector.broadcast %44 : vector<1x128xf32> to vector<8x128xf32>
    %46 = arith.addf %43, %45 : vector<8x128xf32>
    %47 = vector.extract_strided_slice %41 {offsets = [0, 0], sizes = [8, 128], strides = [1, 1]} : vector<8x512xf32> to vector<8x128xf32>
    %48 = vector.extract_strided_slice %41 {offsets = [0, 128], sizes = [8, 128], strides = [1, 1]} : vector<8x512xf32> to vector<8x128xf32>
    %49 = arith.addf %47, %48 : vector<8x128xf32>
    %50 = vector.extract_strided_slice %41 {offsets = [0, 256], sizes = [8, 128], strides = [1, 1]} : vector<8x512xf32> to vector<8x128xf32>
    %51 = arith.addf %49, %50 : vector<8x128xf32>
    %52 = vector.extract_strided_slice %41 {offsets = [0, 384], sizes = [8, 128], strides = [1, 1]} : vector<8x512xf32> to vector<8x128xf32>
    %53 = arith.addf %51, %52 : vector<8x128xf32>
    %cst_34 = arith.constant 2.500000e-01 : f32
    %54 = vector.broadcast %cst_34 : f32 to vector<8x128xf32>
    %55 = arith.mulf %53, %54 : vector<8x128xf32>
    %c0_35 = arith.constant 0 : index
    %c0_36 = arith.constant 0 : index
    %56 = vector.load %arg14[%c0_35, %c0_36] : memref<1x128xf32, #tpu.memory_space<vmem>>, vector<1x128xf32>
    %57 = tpu.iota {dimensions = array<i32: 1>} : vector<8x128xi32>
    %cst_37 = arith.constant 0.000000e+00 : f32
    %58 = vector.broadcast %cst_37 : f32 to vector<8x128xf32>
    %59 = vector.extract_strided_slice %41 {offsets = [0, 0], sizes = [8, 128], strides = [1, 1]} : vector<8x512xf32> to vector<8x128xf32>
    %60 = arith.addf %46, %59 : vector<8x128xf32>
    %61 = arith.subf %60, %55 : vector<8x128xf32>
    %cst_38 = arith.constant dense<0xFF800000> : vector<8xf32>
    %62 = vector.multi_reduction <maximumf>, %61, %cst_38 [1] : vector<8x128xf32> to vector<8xf32>
    %63 = vector.shape_cast %62 : vector<8xf32> to vector<8x1xf32>
    %64 = vector.broadcast %63 : vector<8x1xf32> to vector<8x128xf32>
    %65 = arith.subf %61, %64 : vector<8x128xf32>
    %66 = math.exp %65 : vector<8x128xf32>
    %cst_39 = arith.constant dense<0.000000e+00> : vector<8xf32>
    %67 = vector.multi_reduction <add>, %66, %cst_39 [1] : vector<8x128xf32> to vector<8xf32>
    %68 = vector.shape_cast %67 : vector<8xf32> to vector<8x1xf32>
    %69 = vector.broadcast %68 : vector<8x1xf32> to vector<8x128xf32>
    %70 = arith.divf %66, %69 : vector<8x128xf32>
    %cst_40 = arith.constant 1.000000e-03 : f32
    %71 = vector.broadcast %cst_40 : f32 to vector<8x128xf32>
    %72 = arith.maximumf %70, %71 : vector<8x128xf32>
    %73 = vector.broadcast %56 : vector<1x128xf32> to vector<8x128xf32>
    %74 = arith.mulf %72, %73 : vector<8x128xf32>
    %cst_41 = arith.constant dense<0.000000e+00> : vector<8xf32>
    %75 = vector.multi_reduction <add>, %74, %cst_41 [1] : vector<8x128xf32> to vector<8xf32>
    %76 = vector.shape_cast %75 : vector<8xf32> to vector<8x1xf32>
    %c0_i32 = arith.constant 0 : i32
    %77 = vector.broadcast %c0_i32 : i32 to vector<8x128xi32>
    %78 = arith.cmpi eq, %57, %77 : vector<8x128xi32>
    %79 = vector.shape_cast %76 : vector<8x1xf32> to vector<8x1xf32>
    %80 = vector.broadcast %79 : vector<8x1xf32> to vector<8x128xf32>
    %81 = arith.select %78, %80, %58 : vector<8x128xi1>, vector<8x128xf32>
    %82 = vector.extract_strided_slice %41 {offsets = [0, 128], sizes = [8, 128], strides = [1, 1]} : vector<8x512xf32> to vector<8x128xf32>
    %83 = arith.addf %46, %82 : vector<8x128xf32>
    %84 = arith.subf %83, %55 : vector<8x128xf32>
    %cst_42 = arith.constant dense<0xFF800000> : vector<8xf32>
    %85 = vector.multi_reduction <maximumf>, %84, %cst_42 [1] : vector<8x128xf32> to vector<8xf32>
    %86 = vector.shape_cast %85 : vector<8xf32> to vector<8x1xf32>
    %87 = vector.broadcast %86 : vector<8x1xf32> to vector<8x128xf32>
    %88 = arith.subf %84, %87 : vector<8x128xf32>
    %89 = math.exp %88 : vector<8x128xf32>
    %cst_43 = arith.constant dense<0.000000e+00> : vector<8xf32>
    %90 = vector.multi_reduction <add>, %89, %cst_43 [1] : vector<8x128xf32> to vector<8xf32>
    %91 = vector.shape_cast %90 : vector<8xf32> to vector<8x1xf32>
    %92 = vector.broadcast %91 : vector<8x1xf32> to vector<8x128xf32>
    %93 = arith.divf %89, %92 : vector<8x128xf32>
    %cst_44 = arith.constant 1.000000e-03 : f32
    %94 = vector.broadcast %cst_44 : f32 to vector<8x128xf32>
    %95 = arith.maximumf %93, %94 : vector<8x128xf32>
    %96 = vector.broadcast %56 : vector<1x128xf32> to vector<8x128xf32>
    %97 = arith.mulf %95, %96 : vector<8x128xf32>
    %cst_45 = arith.constant dense<0.000000e+00> : vector<8xf32>
    %98 = vector.multi_reduction <add>, %97, %cst_45 [1] : vector<8x128xf32> to vector<8xf32>
    %99 = vector.shape_cast %98 : vector<8xf32> to vector<8x1xf32>
    %c1_i32 = arith.constant 1 : i32
    %100 = vector.broadcast %c1_i32 : i32 to vector<8x128xi32>
    %101 = arith.cmpi eq, %57, %100 : vector<8x128xi32>
    %102 = vector.shape_cast %99 : vector<8x1xf32> to vector<8x1xf32>
    %103 = vector.broadcast %102 : vector<8x1xf32> to vector<8x128xf32>
    %104 = arith.select %101, %103, %81 : vector<8x128xi1>, vector<8x128xf32>
    %105 = vector.extract_strided_slice %41 {offsets = [0, 256], sizes = [8, 128], strides = [1, 1]} : vector<8x512xf32> to vector<8x128xf32>
    %106 = arith.addf %46, %105 : vector<8x128xf32>
    %107 = arith.subf %106, %55 : vector<8x128xf32>
    %cst_46 = arith.constant dense<0xFF800000> : vector<8xf32>
    %108 = vector.multi_reduction <maximumf>, %107, %cst_46 [1] : vector<8x128xf32> to vector<8xf32>
    %109 = vector.shape_cast %108 : vector<8xf32> to vector<8x1xf32>
    %110 = vector.broadcast %109 : vector<8x1xf32> to vector<8x128xf32>
    %111 = arith.subf %107, %110 : vector<8x128xf32>
    %112 = math.exp %111 : vector<8x128xf32>
    %cst_47 = arith.constant dense<0.000000e+00> : vector<8xf32>
    %113 = vector.multi_reduction <add>, %112, %cst_47 [1] : vector<8x128xf32> to vector<8xf32>
    %114 = vector.shape_cast %113 : vector<8xf32> to vector<8x1xf32>
    %115 = vector.broadcast %114 : vector<8x1xf32> to vector<8x128xf32>
    %116 = arith.divf %112, %115 : vector<8x128xf32>
    %cst_48 = arith.constant 1.000000e-03 : f32
    %117 = vector.broadcast %cst_48 : f32 to vector<8x128xf32>
    %118 = arith.maximumf %116, %117 : vector<8x128xf32>
    %119 = vector.broadcast %56 : vector<1x128xf32> to vector<8x128xf32>
    %120 = arith.mulf %118, %119 : vector<8x128xf32>
    %cst_49 = arith.constant dense<0.000000e+00> : vector<8xf32>
    %121 = vector.multi_reduction <add>, %120, %cst_49 [1] : vector<8x128xf32> to vector<8xf32>
    %122 = vector.shape_cast %121 : vector<8xf32> to vector<8x1xf32>
    %c2_i32 = arith.constant 2 : i32
    %123 = vector.broadcast %c2_i32 : i32 to vector<8x128xi32>
    %124 = arith.cmpi eq, %57, %123 : vector<8x128xi32>
    %125 = vector.shape_cast %122 : vector<8x1xf32> to vector<8x1xf32>
    %126 = vector.broadcast %125 : vector<8x1xf32> to vector<8x128xf32>
    %127 = arith.select %124, %126, %104 : vector<8x128xi1>, vector<8x128xf32>
    %128 = vector.extract_strided_slice %41 {offsets = [0, 384], sizes = [8, 128], strides = [1, 1]} : vector<8x512xf32> to vector<8x128xf32>
    %129 = arith.addf %46, %128 : vector<8x128xf32>
    %130 = arith.subf %129, %55 : vector<8x128xf32>
    %cst_50 = arith.constant dense<0xFF800000> : vector<8xf32>
    %131 = vector.multi_reduction <maximumf>, %130, %cst_50 [1] : vector<8x128xf32> to vector<8xf32>
    %132 = vector.shape_cast %131 : vector<8xf32> to vector<8x1xf32>
    %133 = vector.broadcast %132 : vector<8x1xf32> to vector<8x128xf32>
    %134 = arith.subf %130, %133 : vector<8x128xf32>
    %135 = math.exp %134 : vector<8x128xf32>
    %cst_51 = arith.constant dense<0.000000e+00> : vector<8xf32>
    %136 = vector.multi_reduction <add>, %135, %cst_51 [1] : vector<8x128xf32> to vector<8xf32>
    %137 = vector.shape_cast %136 : vector<8xf32> to vector<8x1xf32>
    %138 = vector.broadcast %137 : vector<8x1xf32> to vector<8x128xf32>
    %139 = arith.divf %135, %138 : vector<8x128xf32>
    %cst_52 = arith.constant 1.000000e-03 : f32
    %140 = vector.broadcast %cst_52 : f32 to vector<8x128xf32>
    %141 = arith.maximumf %139, %140 : vector<8x128xf32>
    %142 = vector.broadcast %56 : vector<1x128xf32> to vector<8x128xf32>
    %143 = arith.mulf %141, %142 : vector<8x128xf32>
    %cst_53 = arith.constant dense<0.000000e+00> : vector<8xf32>
    %144 = vector.multi_reduction <add>, %143, %cst_53 [1] : vector<8x128xf32> to vector<8xf32>
    %145 = vector.shape_cast %144 : vector<8xf32> to vector<8x1xf32>
    %c3_i32 = arith.constant 3 : i32
    %146 = vector.broadcast %c3_i32 : i32 to vector<8x128xi32>
    %147 = arith.cmpi eq, %57, %146 : vector<8x128xi32>
    %148 = vector.shape_cast %145 : vector<8x1xf32> to vector<8x1xf32>
    %149 = vector.broadcast %148 : vector<8x1xf32> to vector<8x128xf32>
    %150 = arith.select %147, %149, %127 : vector<8x128xi1>, vector<8x128xf32>
    %c0_54 = arith.constant 0 : index
    %c0_55 = arith.constant 0 : index
    %151 = vector.load %arg15[%c0_54, %c0_55] : memref<8x128xf32, #tpu.memory_space<vmem>>, vector<8x128xf32>
    tpu.vector_store %arg15[%c0_54, %c0_55], %150 {strides = array<i32>} : memref<8x128xf32, #tpu.memory_space<vmem>>, vector<8x128xf32>,
    return
  }
  func.func @transform_0(%arg0: i32) -> (i32, i32) {
    %c0_i32 = arith.constant 0 : i32
    %c0_i32_0 = arith.constant 0 : i32
    return %arg0, %c0_i32 : i32, i32
  }
  func.func @transform_1(%arg0: i32) -> (i32, i32) {
    %c0_i32 = arith.constant 0 : i32
    %c0_i32_0 = arith.constant 0 : i32
    %c0_i32_1 = arith.constant 0 : i32
    return %c0_i32, %c0_i32_0 : i32, i32
  }
  func.func @transform_2(%arg0: i32) -> (i32, i32) {
    %c0_i32 = arith.constant 0 : i32
    %c0_i32_0 = arith.constant 0 : i32
    %c0_i32_1 = arith.constant 0 : i32
    return %c0_i32, %c0_i32_0 : i32, i32
  }
  func.func @transform_3(%arg0: i32) -> (i32, i32) {
    %c0_i32 = arith.constant 0 : i32
    %c0_i32_0 = arith.constant 0 : i32
    %c0_i32_1 = arith.constant 0 : i32
    return %c0_i32, %c0_i32_0 : i32, i32
  }
  func.func @transform_4(%arg0: i32) -> (i32, i32) {
    %c0_i32 = arith.constant 0 : i32
    %c0_i32_0 = arith.constant 0 : i32
    %c0_i32_1 = arith.constant 0 : i32
    return %c0_i32, %c0_i32_0 : i32, i32
  }
  func.func @transform_5(%arg0: i32) -> (i32, i32) {
    %c0_i32 = arith.constant 0 : i32
    %c0_i32_0 = arith.constant 0 : i32
    %c0_i32_1 = arith.constant 0 : i32
    return %c0_i32, %c0_i32_0 : i32, i32
  }
  func.func @transform_6(%arg0: i32) -> (i32, i32) {
    %c0_i32 = arith.constant 0 : i32
    %c0_i32_0 = arith.constant 0 : i32
    %c0_i32_1 = arith.constant 0 : i32
    return %c0_i32, %c0_i32_0 : i32, i32
  }
  func.func @transform_7(%arg0: i32) -> (i32, i32) {
    %c0_i32 = arith.constant 0 : i32
    %c0_i32_0 = arith.constant 0 : i32
    %c0_i32_1 = arith.constant 0 : i32
    return %c0_i32, %c0_i32_0 : i32, i32
  }
  func.func @transform_8(%arg0: i32) -> (i32, i32) {
    %c0_i32 = arith.constant 0 : i32
    %c0_i32_0 = arith.constant 0 : i32
    %c0_i32_1 = arith.constant 0 : i32
    return %c0_i32, %c0_i32_0 : i32, i32
  }
  func.func @transform_9(%arg0: i32) -> (i32, i32) {
    %c0_i32 = arith.constant 0 : i32
    %c0_i32_0 = arith.constant 0 : i32
    %c0_i32_1 = arith.constant 0 : i32
    return %c0_i32, %c0_i32_0 : i32, i32
  }
  func.func @transform_10(%arg0: i32) -> (i32, i32) {
    %c0_i32 = arith.constant 0 : i32
    %c0_i32_0 = arith.constant 0 : i32
    %c0_i32_1 = arith.constant 0 : i32
    return %c0_i32, %c0_i32_0 : i32, i32
  }
  func.func @transform_11(%arg0: i32) -> (i32, i32) {
    %c0_i32 = arith.constant 0 : i32
    %c0_i32_0 = arith.constant 0 : i32
    %c0_i32_1 = arith.constant 0 : i32
    return %c0_i32, %c0_i32_0 : i32, i32
  }
  func.func @transform_12(%arg0: i32) -> (i32, i32) {
    %c0_i32 = arith.constant 0 : i32
    %c0_i32_0 = arith.constant 0 : i32
    %c0_i32_1 = arith.constant 0 : i32
    return %c0_i32, %c0_i32_0 : i32, i32
  }
  func.func @transform_13(%arg0: i32) -> (i32, i32) {
    %c0_i32 = arith.constant 0 : i32
    %c0_i32_0 = arith.constant 0 : i32
    %c0_i32_1 = arith.constant 0 : i32
    return %c0_i32, %c0_i32_0 : i32, i32
  }
  func.func @transform_14(%arg0: i32) -> (i32, i32) {
    %c0_i32 = arith.constant 0 : i32
    %c0_i32_0 = arith.constant 0 : i32
    return %arg0, %c0_i32 : i32, i32
  }
}

</mosaic_0001>

<llo_original>
// kernel: tpu_custom_call.1
$region0: #{tpu_custom_call.1}
  #allocation0 [shape = 'u32[]', space=smem, size = 0x4, offset = 0x4, fixed_abs, tag = 'smem constant byte address 0x4 - core index']
  #allocation1 [shape = 'u32[144,128]{1,0:T(1,128)}', space=vmem, size = 0x12000, scoped, tag = 'internal scratch']
  %s0 = inlined_call_operand.hbm [shape: f32[8,32], index: 0, kind: input, shape index: {}]
  %s1 = inlined_call_operand.hbm [shape: bf16[32,256], index: 1, kind: input, shape index: {}]
  %s2 = inlined_call_operand.vmem [shape: f32[1,256], index: 2, kind: input, shape index: {}]
  %s3 = inlined_call_operand.hbm [shape: bf16[256,256], index: 3, kind: input, shape index: {}]
  %s4 = inlined_call_operand.vmem [shape: f32[1,256], index: 4, kind: input, shape index: {}]
  %s5 = inlined_call_operand.hbm [shape: bf16[256,128], index: 5, kind: input, shape index: {}]
  %s6 = inlined_call_operand.vmem [shape: f32[1,128], index: 6, kind: input, shape index: {}]
  %s7 = inlined_call_operand.hbm [shape: bf16[128,256], index: 7, kind: input, shape index: {}]
  %s8 = inlined_call_operand.vmem [shape: f32[1,256], index: 8, kind: input, shape index: {}]
  %s9 = inlined_call_operand.hbm [shape: bf16[128,512], index: 9, kind: input, shape index: {}]
  %s10 = inlined_call_operand.vmem [shape: f32[1,512], index: 10, kind: input, shape index: {}]
  %s11 = inlined_call_operand.hbm [shape: bf16[128,128], index: 11, kind: input, shape index: {}]
  %s12 = inlined_call_operand.vmem [shape: f32[1,128], index: 12, kind: input, shape index: {}]
  %s13 = inlined_call_operand.vmem [shape: f32[1,128], index: 13, kind: input, shape index: {}]
  %s14 = inlined_call_operand.hbm [shape: f32[8,128], index: 14, kind: output, shape index: {}]
  %s15 = sld [smem:[#allocation0]]
  $region94: #{tpu_custom_call.1} parent=0
    _
  %s17 = ssub.s32 1, %s15
  %s18 = scalar_select 0, %s17, %s15
  $region1: #{tpu_custom_call.1} parent=0
    #allocation2 [shape = 'u8[4096]{0}', space=vmem, size = 0x1000, scoped, tag = 'input window, operand 0, single buffered']
    #allocation3 [shape = 's32[1]{0}', space=sflag, size = 0x4, scoped, tag = 'scoped memory for tpu_custom_call.1']
    #allocation4 [shape = 's32[1]{0}', space=sflag, size = 0x4, scoped, tag = 'scoped memory for tpu_custom_call.1']
    #allocation5 [shape = 'u8[16384]{0}', space=vmem, size = 0x4000, scoped, tag = 'input window, operand 1, single buffered']
    #allocation6 [shape = 's32[1]{0}', space=sflag, size = 0x4, scoped, tag = 'scoped memory for tpu_custom_call.1']
    #allocation7 [shape = 'u8[131072]{0}', space=vmem, size = 0x20000, scoped, tag = 'input window, operand 3, single buffered']
    #allocation8 [shape = 'u8[65536]{0}', space=vmem, size = 0x10000, scoped, tag = 'input window, operand 5, single buffered']
    #allocation9 [shape = 's32[1]{0}', space=sflag, size = 0x4, scoped, tag = 'scoped memory for tpu_custom_call.1']
    #allocation10 [shape = 'u8[65536]{0}', space=vmem, size = 0x10000, scoped, tag = 'input window, operand 7, single buffered']
    #allocation11 [shape = 'u8[131072]{0}', space=vmem, size = 0x20000, scoped, tag = 'input window, operand 9, single buffered']
    #allocation12 [shape = 's32[1]{0}', space=sflag, size = 0x4, scoped, tag = 'scoped memory for tpu_custom_call.1']
    #allocation13 [shape = 'u8[32768]{0}', space=vmem, size = 0x8000, scoped, tag = 'input window, operand 11, single buffered']
    #allocation14 [shape = 'u8[4096]{0}', space=vmem, size = 0x1000, scoped, tag = 'output window, operand 0, single buffered']
    %19 = vsyncpa [#allocation3], 0
    %20 = vsyncpa [#allocation6], 0
    %21 = vsyncpa [#allocation9], 0
    %22 = vsyncpa [#allocation12], 0
    %23 = vsyncpa [#allocation4], 0
    // Predicated region
    $region2: #{tpu_custom_call.1} parent=1 // pred_check
      _
    $region3: #{tpu_custom_call.1} parent=1 // pred_check_branch
      %25 = sbr.rel (0) target = $region5
    $region4: #{tpu_custom_call.1} parent=1 // pred_region
      %s27 = ssub.s32 128, 128
      %28 = vsyncadd [#allocation3], %s27
      %s30 = sshll.u32 [#allocation2], 4
      %s31 = int_to_ptr.vmem [resolvable:$true] %s30
      %33 = dma.hbm_to_vmem [thread:$0]  %s0, 128, %s31, [#allocation3]
    $region5: #{tpu_custom_call.1} parent=1 // pred_fallthru
      _
    // Predicated region
    $region6: #{tpu_custom_call.1} parent=1 // pred_check
      _
    $region7: #{tpu_custom_call.1} parent=1 // pred_check_branch
      %35 = sbr.rel (0) target = $region9
    $region8: #{tpu_custom_call.1} parent=1 // pred_region
      %s37 = ssub.s32 512, 512
      %38 = vsyncadd [#allocation6], %s37
      %s39 = sshll.u32 [#allocation5], 4
      %s40 = int_to_ptr.vmem [resolvable:$true] %s39
      %45 = dma.hbm_to_vmem [thread:$0]  %s1, 512, %s40, [#allocation6], 128, 128, 8
    $region9: #{tpu_custom_call.1} parent=1 // pred_fallthru
      _
    // Predicated region
    $region10: #{tpu_custom_call.1} parent=1 // pred_check
      _
    $region11: #{tpu_custom_call.1} parent=1 // pred_check_branch
      %47 = sbr.rel (0) target = $region13
    $region12: #{tpu_custom_call.1} parent=1 // pred_region
      _
    $region13: #{tpu_custom_call.1} parent=1 // pred_fallthru
      _
    // Predicated region
    $region14: #{tpu_custom_call.1} parent=1 // pred_check
      _
    $region15: #{tpu_custom_call.1} parent=1 // pred_check_branch
      %49 = sbr.rel (0) target = $region17
    $region16: #{tpu_custom_call.1} parent=1 // pred_region
      %s51 = ssub.s32 4096, 4096
      %52 = vsyncadd [#allocation6], %s51
      %s53 = sshll.u32 [#allocation7], 4
      %s54 = int_to_ptr.vmem [resolvable:$true] %s53
      %59 = dma.hbm_to_vmem [thread:$0]  %s3, 4096, %s54, [#allocation6], 128, 128, 8
    $region17: #{tpu_custom_call.1} parent=1 // pred_fallthru
      _
    // Predicated region
    $region18: #{tpu_custom_call.1} parent=1 // pred_check
      _
    $region19: #{tpu_custom_call.1} parent=1 // pred_check_branch
      %61 = sbr.rel (0) target = $region21
    $region20: #{tpu_custom_call.1} parent=1 // pred_region
      _
    $region21: #{tpu_custom_call.1} parent=1 // pred_fallthru
      _
    // Predicated region
    $region22: #{tpu_custom_call.1} parent=1 // pred_check
      _
    $region23: #{tpu_custom_call.1} parent=1 // pred_check_branch
      %63 = sbr.rel (0) target = $region25
    $region24: #{tpu_custom_call.1} parent=1 // pred_region
      %s65 = ssub.s32 2048, 2048
      %66 = vsyncadd [#allocation9], %s65
      %s67 = sshll.u32 [#allocation8], 4
      %s68 = int_to_ptr.vmem [resolvable:$true] %s67
      %73 = dma.hbm_to_vmem [thread:$0]  %s5, 2048, %s68, [#allocation9], 64, 64, 4
    $region25: #{tpu_custom_call.1} parent=1 // pred_fallthru
      _
    // Predicated region
    $region26: #{tpu_custom_call.1} parent=1 // pred_check
      _
    $region27: #{tpu_custom_call.1} parent=1 // pred_check_branch
      %75 = sbr.rel (0) target = $region29
    $region28: #{tpu_custom_call.1} parent=1 // pred_region
      _
    $region29: #{tpu_custom_call.1} parent=1 // pred_fallthru
      _
    // Predicated region
    $region30: #{tpu_custom_call.1} parent=1 // pred_check
      _
    $region31: #{tpu_custom_call.1} parent=1 // pred_check_branch
      %77 = sbr.rel (0) target = $region33
    $region32: #{tpu_custom_call.1} parent=1 // pred_region
      %s79 = ssub.s32 2048, 2048
      %80 = vsyncadd [#allocation9], %s79
      %s81 = sshll.u32 [#allocation10], 4
      %s82 = int_to_ptr.vmem [resolvable:$true] %s81
      %87 = dma.hbm_to_vmem [thread:$0]  %s7, 2048, %s82, [#allocation9], 128, 128, 8
    $region33: #{tpu_custom_call.1} parent=1 // pred_fallthru
      _
    // Predicated region
    $region34: #{tpu_custom_call.1} parent=1 // pred_check
      _
    $region35: #{tpu_custom_call.1} parent=1 // pred_check_branch
      %89 = sbr.rel (0) target = $region37
    $region36: #{tpu_custom_call.1} parent=1 // pred_region
      _
    $region37: #{tpu_custom_call.1} parent=1 // pred_fallthru
      _
    // Predicated region
    $region38: #{tpu_custom_call.1} parent=1 // pred_check
      _
    $region39: #{tpu_custom_call.1} parent=1 // pred_check_branch
      %91 = sbr.rel (0) target = $region41
    $region40: #{tpu_custom_call.1} parent=1 // pred_region
      %s93 = ssub.s32 4096, 4096
      %94 = vsyncadd [#allocation12], %s93
      %s95 = sshll.u32 [#allocation11], 4
      %s96 = int_to_ptr.vmem [resolvable:$true] %s95
      %101 = dma.hbm_to_vmem [thread:$0]  %s9, 4096, %s96, [#allocation12], 256, 256, 16
    $region41: #{tpu_custom_call.1} parent=1 // pred_fallthru
      _
    // Predicated region
    $region42: #{tpu_custom_call.1} parent=1 // pred_check
      _
    $region43: #{tpu_custom_call.1} parent=1 // pred_check_branch
      %103 = sbr.rel (0) target = $region45
    $region44: #{tpu_custom_call.1} parent=1 // pred_region
      _
    $region45: #{tpu_custom_call.1} parent=1 // pred_fallthru
      _
    // Predicated region
    $region46: #{tpu_custom_call.1} parent=1 // pred_check
      _
    $region47: #{tpu_custom_call.1} parent=1 // pred_check_branch
      %105 = sbr.rel (0) target = $region49
    $region48: #{tpu_custom_call.1} parent=1 // pred_region
      %s107 = ssub.s32 1024, 1024
      %108 = vsyncadd [#allocation12], %s107
      %s109 = sshll.u32 [#allocation13], 4
      %s110 = int_to_ptr.vmem [resolvable:$true] %s109
      %115 = dma.hbm_to_vmem [thread:$0]  %s11, 1024, %s110, [#allocation12], 64, 64, 4
    $region49: #{tpu_custom_call.1} parent=1 // pred_fallthru
      _
    // Predicated region
    $region50: #{tpu_custom_call.1} parent=1 // pred_check
      _
    $region51: #{tpu_custom_call.1} parent=1 // pred_check_branch
      %117 = sbr.rel (0) target = $region53
    $region52: #{tpu_custom_call.1} parent=1 // pred_region
      _
    $region53: #{tpu_custom_call.1} parent=1 // pred_fallthru
      _
    // Predicated region
    $region54: #{tpu_custom_call.1} parent=1 // pred_check
      _
    $region55: #{tpu_custom_call.1} parent=1 // pred_check_branch
      %119 = sbr.rel (0) target = $region57
    $region56: #{tpu_custom_call.1} parent=1 // pred_region
      _
    $region57: #{tpu_custom_call.1} parent=1 // pred_fallthru
      _
    // Predicated region
    $region58: #{tpu_custom_call.1} parent=1 // pred_check
      _
    $region59: #{tpu_custom_call.1} parent=1 // pred_check_branch
      %121 = sbr.rel (0) target = $region61
    $region60: #{tpu_custom_call.1} parent=1 // pred_region
      %122 = dma.done [#allocation3], 128
    $region61: #{tpu_custom_call.1} parent=1 // pred_fallthru
      _
    // Predicated region
    $region62: #{tpu_custom_call.1} parent=1 // pred_check
      _
    $region63: #{tpu_custom_call.1} parent=1 // pred_check_branch
      %124 = sbr.rel (0) target = $region65
    $region64: #{tpu_custom_call.1} parent=1 // pred_region
      %125 = dma.done [#allocation6], 512
    $region65: #{tpu_custom_call.1} parent=1 // pred_fallthru
      _
    // Predicated region
    $region66: #{tpu_custom_call.1} parent=1 // pred_check
      _
    $region67: #{tpu_custom_call.1} parent=1 // pred_check_branch
      %127 = sbr.rel (0) target = $region69
    $region68: #{tpu_custom_call.1} parent=1 // pred_region
      %128 = dma.done [#allocation6], 4096
    $region69: #{tpu_custom_call.1} parent=1 // pred_fallthru
      _
    // Predicated region
    $region70: #{tpu_custom_call.1} parent=1 // pred_check
      _
    $region71: #{tpu_custom_call.1} parent=1 // pred_check_branch
      %130 = sbr.rel (0) target = $region73
    $region72: #{tpu_custom_call.1} parent=1 // pred_region
      %131 = dma.done [#allocation9], 2048
    $region73: #{tpu_custom_call.1} parent=1 // pred_fallthru
      _
    // Predicated region
    $region74: #{tpu_custom_call.1} parent=1 // pred_check
      _
    $region75: #{tpu_custom_call.1} parent=1 // pred_check_branch
      %133 = sbr.rel (0) target = $region77
    $region76: #{tpu_custom_call.1} parent=1 // pred_region
      %134 = dma.done [#allocation9], 2048
    $region77: #{tpu_custom_call.1} parent=1 // pred_fallthru
      _
    // Predicated region
    $region78: #{tpu_custom_call.1} parent=1 // pred_check
      _
    $region79: #{tpu_custom_call.1} parent=1 // pred_check_branch
      %136 = sbr.rel (0) target = $region81
    $region80: #{tpu_custom_call.1} parent=1 // pred_region
      %137 = dma.done [#allocation12], 4096
    $region81: #{tpu_custom_call.1} parent=1 // pred_fallthru
      _
    // Predicated region
    $region82: #{tpu_custom_call.1} parent=1 // pred_check
      _
    $region83: #{tpu_custom_call.1} parent=1 // pred_check_branch
      %139 = sbr.rel (0) target = $region85
    $region84: #{tpu_custom_call.1} parent=1 // pred_region
      %140 = dma.done [#allocation12], 1024
    $region85: #{tpu_custom_call.1} parent=1 // pred_fallthru
      _
    %v142 = vld [vmem:[#allocation2] sm:$0xff]
    %v143 = vpack.c.bf16 %v142, %v142
    %v144 = vld [vmem:[#allocation5] sm:$0xff]
    %v145 = vld [vmem:[#allocation5 + $0x8] sm:$0xff]
    %v146 = vld [vmem:[#allocation5 + $0x10] sm:$0xff]
    %v147 = vld [vmem:[#allocation5 + $0x18] sm:$0xff]
    %v148 = vld [vmem:[%s2] sm:$0x3]
    %v150 = vlaneseq
    %v151 = vshrl.u32 %v150, 7
    %v152 = vsub.s32 0, %v151
    %v153 = vrot.slane %v148, %v152
    %v154 = vlaneseq
    %v155 = vshrl.u32 %v154, 7
    %v156 = vsub.s32 1, %v155
    %v157 = vrot.slane %v148, %v156
    %v164 = vunpack.c.l.b16 %v144
    %v165 = vunpack.c.h.b16 %v144
    %v166 = vunpack.c.l.b16 %v145
    %v167 = vunpack.c.h.b16 %v145
    %v168 = vunpack.c.l.b16 %v146
    %v169 = vunpack.c.h.b16 %v146
    %v170 = vunpack.c.l.b16 %v147
    %v171 = vunpack.c.h.b16 %v147
    %v172 = vpack.c.b16 %v166, %v164
    %v173 = vpack.c.b16 %v167, %v165
    %v174 = vpack.c.b16 %v170, %v168
    %v175 = vpack.c.b16 %v171, %v169
    %vm180 = vcmask 261120
    %v182 = vsel %vm180, %v143, 0
    %184 = vmatprep.subr.bf16.mxu0 %v173
    %185 = vmatpush1.bf16.msra.mxu0 %v172
    %186 = vmatprep.subr.bf16.mxu0 %v175
    %187 = vmatpush1.bf16.msra.mxu0 %v174
    %188 = vmatprep.subr.bf16.mxu0 0
    %189 = vmatpush1.bf16.msra.mxu0 0
    %190 = vmatprep.subr.bf16.mxu0 0
    %191 = vmatpush1.bf16.msra.mxu0 0
    %192 = vmatprep.subr.bf16.mxu0 0
    %193 = vmatpush1.bf16.msra.mxu0 0
    %194 = vmatprep.subr.bf16.mxu0 0
    %195 = vmatpush1.bf16.msra.mxu0 0
    %196 = vmatprep.subr.bf16.mxu0 0
    %197 = vmatpush1.bf16.msra.mxu0 0
    %198 = vmatprep.subr.bf16.mxu0 0
    %199 = vmatpush1.bf16.msra.mxu0 0
    %200 = vmatprep.subr.bf16.mxu0 0
    %201 = vmatpush1.bf16.msra.mxu0 0
    %202 = vmatprep.subr.bf16.mxu0 0
    %203 = vmatpush1.bf16.msra.mxu0 0
    %204 = vmatprep.subr.bf16.mxu0 0
    %205 = vmatpush1.bf16.msra.mxu0 0
    %206 = vmatprep.subr.bf16.mxu0 0
    %207 = vmatpush1.bf16.msra.mxu0 0
    %208 = vmatprep.subr.bf16.mxu0 0
    %209 = vmatpush1.bf16.msra.mxu0 0
    %210 = vmatprep.subr.bf16.mxu0 0
    %211 = vmatpush1.bf16.msra.mxu0 0
    %212 = vmatprep.subr.bf16.mxu0 0
    %213 = vmatpush1.bf16.msra.mxu0 0
    %214 = vmatprep.subr.bf16.mxu0 0
    %215 = vmatpush1.bf16.msra.mxu0 0
    %216 = vmatprep.mubr.bf16.mxu0 0
    %217 = vmatmul.mubr.bf16.gmra.mrb[0].mxu0 %v182
    %v218 = vpop.f32.mrb[0].mxu0
    %v219 = vadd.f32 %v153, %v218
    %v220 = vpop.f32.mrb[0].mxu0
    %v221 = vadd.f32 %v157, %v220
    %v222 = vpop.f32.mrb[0].mxu0
    %v223 = vpop.f32.mrb[0].mxu0
    %224 = vdwg.mxu0
    %v225 = vmax.f32 %v219, 0.0
    %v226 = vmax.f32 %v221, 0.0
    %v227 = vpack.c.bf16 %v225, %v225
    %v228 = vpack.c.bf16 %v226, %v226
    %v229 = vld [vmem:[#allocation7] sm:$0xff]
    %v230 = vld [vmem:[#allocation7 + $0x8] sm:$0xff]
    %v231 = vld [vmem:[#allocation7 + $0x10] sm:$0xff]
    %v232 = vld [vmem:[#allocation7 + $0x18] sm:$0xff]
    %v233 = vld [vmem:[#allocation7 + $0x20] sm:$0xff]
    %v234 = vld [vmem:[#allocation7 + $0x28] sm:$0xff]
    %v235 = vld [vmem:[#allocation7 + $0x30] sm:$0xff]
    %v236 = vld [vmem:[#allocation7 + $0x38] sm:$0xff]
    %v237 = vld [vmem:[#allocation7 + $0x40] sm:$0xff]
    %v238 = vld [vmem:[#allocation7 + $0x48] sm:$0xff]
    %v239 = vld [vmem:[#allocation7 + $0x50] sm:$0xff]
    %v240 = vld [vmem:[#allocation7 + $0x58] sm:$0xff]
    %v241 = vld [vmem:[#allocation7 + $0x60] sm:$0xff]
    %v242 = vld [vmem:[#allocation7 + $0x68] sm:$0xff]
    %v243 = vld [vmem:[#allocation7 + $0x70] sm:$0xff]
    %v244 = vld [vmem:[#allocation7 + $0x78] sm:$0xff]
    %v245 = vld [vmem:[#allocation7 + $0x80] sm:$0xff]
    %v246 = vld [vmem:[#allocation7 + $0x88] sm:$0xff]
    %v247 = vld [vmem:[#allocation7 + $0x90] sm:$0xff]
    %v248 = vld [vmem:[#allocation7 + $0x98] sm:$0xff]
    %v249 = vld [vmem:[#allocation7 + $0xa0] sm:$0xff]
    %v250 = vld [vmem:[#allocation7 + $0xa8] sm:$0xff]
    %v251 = vld [vmem:[#allocation7 + $0xb0] sm:$0xff]
    %v252 = vld [vmem:[#allocation7 + $0xb8] sm:$0xff]
    %v253 = vld [vmem:[#allocation7 + $0xc0] sm:$0xff]
    %v254 = vld [vmem:[#allocation7 + $0xc8] sm:$0xff]
    %v255 = vld [vmem:[#allocation7 + $0xd0] sm:$0xff]
    %v256 = vld [vmem:[#allocation7 + $0xd8] sm:$0xff]
    %v257 = vld [vmem:[#allocation7 + $0xe0] sm:$0xff]
    %v258 = vld [vmem:[#allocation7 + $0xe8] sm:$0xff]
    %v259 = vld [vmem:[#allocation7 + $0xf0] sm:$0xff]
    %v260 = vld [vmem:[#allocation7 + $0xf8] sm:$0xff]
    %v261 = vld [vmem:[%s4] sm:$0x3]
    %v263 = vlaneseq
    %v264 = vshrl.u32 %v263, 7
    %v265 = vsub.s32 0, %v264
    %v266 = vrot.slane %v261, %v265
    %v267 = vlaneseq
    %v268 = vshrl.u32 %v267, 7
    %v269 = vsub.s32 1, %v268
    %v270 = vrot.slane %v261, %v269
    %v305 = vunpack.c.l.b16 %v229
    %v306 = vunpack.c.h.b16 %v229
    %v307 = vunpack.c.l.b16 %v230
    %v308 = vunpack.c.h.b16 %v230
    %v309 = vunpack.c.l.b16 %v231
    %v310 = vunpack.c.h.b16 %v231
    %v311 = vunpack.c.l.b16 %v232
    %v312 = vunpack.c.h.b16 %v232
    %v313 = vunpack.c.l.b16 %v233
    %v314 = vunpack.c.h.b16 %v233
    %v315 = vunpack.c.l.b16 %v234
    %v316 = vunpack.c.h.b16 %v234
    %v317 = vunpack.c.l.b16 %v235
    %v318 = vunpack.c.h.b16 %v235
    %v319 = vunpack.c.l.b16 %v236
    %v320 = vunpack.c.h.b16 %v236
    %v321 = vunpack.c.l.b16 %v237
    %v322 = vunpack.c.h.b16 %v237
    %v323 = vunpack.c.l.b16 %v238
    %v324 = vunpack.c.h.b16 %v238
    %v325 = vunpack.c.l.b16 %v239
    %v326 = vunpack.c.h.b16 %v239
    %v327 = vunpack.c.l.b16 %v240
    %v328 = vunpack.c.h.b16 %v240
    %v329 = vunpack.c.l.b16 %v241
    %v330 = vunpack.c.h.b16 %v241
    %v331 = vunpack.c.l.b16 %v242
    %v332 = vunpack.c.h.b16 %v242
    %v333 = vunpack.c.l.b16 %v243
    %v334 = vunpack.c.h.b16 %v243
    %v335 = vunpack.c.l.b16 %v244
    %v336 = vunpack.c.h.b16 %v244
    %v337 = vunpack.c.l.b16 %v245
    %v338 = vunpack.c.h.b16 %v245
    %v339 = vunpack.c.l.b16 %v246
    %v340 = vunpack.c.h.b16 %v246
    %v341 = vunpack.c.l.b16 %v247
    %v342 = vunpack.c.h.b16 %v247
    %v343 = vunpack.c.l.b16 %v248
    %v344 = vunpack.c.h.b16 %v248
    %v345 = vunpack.c.l.b16 %v249
    %v346 = vunpack.c.h.b16 %v249
    %v347 = vunpack.c.l.b16 %v250
    %v348 = vunpack.c.h.b16 %v250
    %v349 = vunpack.c.l.b16 %v251
    %v350 = vunpack.c.h.b16 %v251
    %v351 = vunpack.c.l.b16 %v252
    %v352 = vunpack.c.h.b16 %v252
    %v353 = vunpack.c.l.b16 %v253
    %v354 = vunpack.c.h.b16 %v253
    %v355 = vunpack.c.l.b16 %v254
    %v356 = vunpack.c.h.b16 %v254
    %v357 = vunpack.c.l.b16 %v255
    %v358 = vunpack.c.h.b16 %v255
    %v359 = vunpack.c.l.b16 %v256
    %v360 = vunpack.c.h.b16 %v256
    %v361 = vunpack.c.l.b16 %v257
    %v362 = vunpack.c.h.b16 %v257
    %v363 = vunpack.c.l.b16 %v258
    %v364 = vunpack.c.h.b16 %v258
    %v365 = vunpack.c.l.b16 %v259
    %v366 = vunpack.c.h.b16 %v259
    %v367 = vunpack.c.l.b16 %v260
    %v368 = vunpack.c.h.b16 %v260
    %v369 = vpack.c.b16 %v307, %v305
    %v370 = vpack.c.b16 %v308, %v306
    %v371 = vpack.c.b16 %v311, %v309
    %v372 = vpack.c.b16 %v312, %v310
    %v373 = vpack.c.b16 %v315, %v313
    %v374 = vpack.c.b16 %v316, %v314
    %v375 = vpack.c.b16 %v319, %v317
    %v376 = vpack.c.b16 %v320, %v318
    %v377 = vpack.c.b16 %v323, %v321
    %v378 = vpack.c.b16 %v324, %v322
    %v379 = vpack.c.b16 %v327, %v325
    %v380 = vpack.c.b16 %v328, %v326
    %v381 = vpack.c.b16 %v331, %v329
    %v382 = vpack.c.b16 %v332, %v330
    %v383 = vpack.c.b16 %v335, %v333
    %v384 = vpack.c.b16 %v336, %v334
    %v385 = vpack.c.b16 %v339, %v337
    %v386 = vpack.c.b16 %v340, %v338
    %v387 = vpack.c.b16 %v343, %v341
    %v388 = vpack.c.b16 %v344, %v342
    %v389 = vpack.c.b16 %v347, %v345
    %v390 = vpack.c.b16 %v348, %v346
    %v391 = vpack.c.b16 %v351, %v349
    %v392 = vpack.c.b16 %v352, %v350
    %v393 = vpack.c.b16 %v355, %v353
    %v394 = vpack.c.b16 %v356, %v354
    %v395 = vpack.c.b16 %v359, %v357
    %v396 = vpack.c.b16 %v360, %v358
    %v397 = vpack.c.b16 %v363, %v361
    %v398 = vpack.c.b16 %v364, %v362
    %v399 = vpack.c.b16 %v367, %v365
    %v400 = vpack.c.b16 %v368, %v366
    %433 = vmatprep.subr.bf16.mxu0 %v370
    %434 = vmatpush1.bf16.msra.mxu0 %v369
    %435 = vmatprep.subr.bf16.mxu0 %v372
    %436 = vmatpush1.bf16.msra.mxu0 %v371
    %437 = vmatprep.subr.bf16.mxu0 %v374
    %438 = vmatpush1.bf16.msra.mxu0 %v373
    %439 = vmatprep.subr.bf16.mxu0 %v376
    %440 = vmatpush1.bf16.msra.mxu0 %v375
    %441 = vmatprep.subr.bf16.mxu0 %v378
    %442 = vmatpush1.bf16.msra.mxu0 %v377
    %443 = vmatprep.subr.bf16.mxu0 %v380
    %444 = vmatpush1.bf16.msra.mxu0 %v379
    %445 = vmatprep.subr.bf16.mxu0 %v382
    %446 = vmatpush1.bf16.msra.mxu0 %v381
    %447 = vmatprep.subr.bf16.mxu0 %v384
    %448 = vmatpush1.bf16.msra.mxu0 %v383
    %449 = vmatprep.subr.bf16.mxu0 %v386
    %450 = vmatpush1.bf16.msra.mxu0 %v385
    %451 = vmatprep.subr.bf16.mxu0 %v388
    %452 = vmatpush1.bf16.msra.mxu0 %v387
    %453 = vmatprep.subr.bf16.mxu0 %v390
    %454 = vmatpush1.bf16.msra.mxu0 %v389
    %455 = vmatprep.subr.bf16.mxu0 %v392
    %456 = vmatpush1.bf16.msra.mxu0 %v391
    %457 = vmatprep.subr.bf16.mxu0 %v394
    %458 = vmatpush1.bf16.msra.mxu0 %v393
    %459 = vmatprep.subr.bf16.mxu0 %v396
    %460 = vmatpush1.bf16.msra.mxu0 %v395
    %461 = vmatprep.subr.bf16.mxu0 %v398
    %462 = vmatpush1.bf16.msra.mxu0 %v397
    %463 = vmatprep.subr.bf16.mxu0 %v400
    %464 = vmatpush1.bf16.msra.mxu0 %v399
    %465 = vmatprep.mubr.bf16.mxu0 %v228
    %466 = vmatmul.mubr.bf16.gmra.mrb[0].mxu0 %v227
    %v467 = vpop.f32.mrb[0].mxu0
    %v468 = vadd.f32 %v266, %v467
    %v469 = vpop.f32.mrb[0].mxu0
    %v470 = vadd.f32 %v270, %v469
    %v471 = vpop.f32.mrb[0].mxu0
    %v472 = vpop.f32.mrb[0].mxu0
    %473 = vdwg.mxu0
    %v474 = vmax.f32 %v468, 0.0
    %v475 = vmax.f32 %v470, 0.0
    %v476 = vpack.c.bf16 %v474, %v474
    %v477 = vpack.c.bf16 %v475, %v475
    %v478 = vld [vmem:[#allocation8] sm:$0xf]
    %v479 = vld [vmem:[#allocation8 + $0x4] sm:$0xf]
    %v480 = vld [vmem:[#allocation8 + $0x8] sm:$0xf]
    %v481 = vld [vmem:[#allocation8 + $0xc] sm:$0xf]
    %v482 = vld [vmem:[#allocation8 + $0x10] sm:$0xf]
    %v483 = vld [vmem:[#allocation8 + $0x14] sm:$0xf]
    %v484 = vld [vmem:[#allocation8 + $0x18] sm:$0xf]
    %v485 = vld [vmem:[#allocation8 + $0x1c] sm:$0xf]
    %v486 = vld [vmem:[#allocation8 + $0x20] sm:$0xf]
    %v487 = vld [vmem:[#allocation8 + $0x24] sm:$0xf]
    %v488 = vld [vmem:[#allocation8 + $0x28] sm:$0xf]
    %v489 = vld [vmem:[#allocation8 + $0x2c] sm:$0xf]
    %v490 = vld [vmem:[#allocation8 + $0x30] sm:$0xf]
    %v491 = vld [vmem:[#allocation8 + $0x34] sm:$0xf]
    %v492 = vld [vmem:[#allocation8 + $0x38] sm:$0xf]
    %v493 = vld [vmem:[#allocation8 + $0x3c] sm:$0xf]
    %v494 = vld [vmem:[#allocation8 + $0x40] sm:$0xf]
    %v495 = vld [vmem:[#allocation8 + $0x44] sm:$0xf]
    %v496 = vld [vmem:[#allocation8 + $0x48] sm:$0xf]
    %v497 = vld [vmem:[#allocation8 + $0x4c] sm:$0xf]
    %v498 = vld [vmem:[#allocation8 + $0x50] sm:$0xf]
    %v499 = vld [vmem:[#allocation8 + $0x54] sm:$0xf]
    %v500 = vld [vmem:[#allocation8 + $0x58] sm:$0xf]
    %v501 = vld [vmem:[#allocation8 + $0x5c] sm:$0xf]
    %v502 = vld [vmem:[#allocation8 + $0x60] sm:$0xf]
    %v503 = vld [vmem:[#allocation8 + $0x64] sm:$0xf]
    %v504 = vld [vmem:[#allocation8 + $0x68] sm:$0xf]
    %v505 = vld [vmem:[#allocation8 + $0x6c] sm:$0xf]
    %v506 = vld [vmem:[#allocation8 + $0x70] sm:$0xf]
    %v507 = vld [vmem:[#allocation8 + $0x74] sm:$0xf]
    %v508 = vld [vmem:[#allocation8 + $0x78] sm:$0xf]
    %v509 = vld [vmem:[#allocation8 + $0x7c] sm:$0xf]
    %v510 = vld [vmem:[%s6] sm:$0x1]
    %v512 = vlaneseq
    %v513 = vshrl.u32 %v512, 7
    %v514 = vsub.s32 0, %v513
    %v515 = vrot.slane %v510, %v514
    %v549 = vunpack.c.l.b16 %v478
    %v550 = vunpack.c.l.b16 %v479
    %v551 = vunpack.c.l.b16 %v480
    %v552 = vunpack.c.l.b16 %v481
    %v553 = vunpack.c.l.b16 %v482
    %v554 = vunpack.c.l.b16 %v483
    %v555 = vunpack.c.l.b16 %v484
    %v556 = vunpack.c.l.b16 %v485
    %v557 = vunpack.c.l.b16 %v486
    %v558 = vunpack.c.l.b16 %v487
    %v559 = vunpack.c.l.b16 %v488
    %v560 = vunpack.c.l.b16 %v489
    %v561 = vunpack.c.l.b16 %v490
    %v562 = vunpack.c.l.b16 %v491
    %v563 = vunpack.c.l.b16 %v492
    %v564 = vunpack.c.l.b16 %v493
    %v565 = vunpack.c.l.b16 %v494
    %v566 = vunpack.c.l.b16 %v495
    %v567 = vunpack.c.l.b16 %v496
    %v568 = vunpack.c.l.b16 %v497
    %v569 = vunpack.c.l.b16 %v498
    %v570 = vunpack.c.l.b16 %v499
    %v571 = vunpack.c.l.b16 %v500
    %v572 = vunpack.c.l.b16 %v501
    %v573 = vunpack.c.l.b16 %v502
    %v574 = vunpack.c.l.b16 %v503
    %v575 = vunpack.c.l.b16 %v504
    %v576 = vunpack.c.l.b16 %v505
    %v577 = vunpack.c.l.b16 %v506
    %v578 = vunpack.c.l.b16 %v507
    %v579 = vunpack.c.l.b16 %v508
    %v580 = vunpack.c.l.b16 %v509
    %v581 = vpack.c.b16 %v550, %v549
    %v582 = vpack.c.b16 %v552, %v551
    %v583 = vpack.c.b16 %v554, %v553
    %v584 = vpack.c.b16 %v556, %v555
    %v585 = vpack.c.b16 %v558, %v557
    %v586 = vpack.c.b16 %v560, %v559
    %v587 = vpack.c.b16 %v562, %v561
    %v588 = vpack.c.b16 %v564, %v563
    %v589 = vpack.c.b16 %v566, %v565
    %v590 = vpack.c.b16 %v568, %v567
    %v591 = vpack.c.b16 %v570, %v569
    %v592 = vpack.c.b16 %v572, %v571
    %v593 = vpack.c.b16 %v574, %v573
    %v594 = vpack.c.b16 %v576, %v575
    %v595 = vpack.c.b16 %v578, %v577
    %v596 = vpack.c.b16 %v580, %v579
    %613 = vmatprep.subr.bf16.mxu0 0
    %614 = vmatpush1.bf16.msra.mxu0 %v581
    %615 = vmatprep.subr.bf16.mxu0 0
    %616 = vmatpush1.bf16.msra.mxu0 %v582
    %617 = vmatprep.subr.bf16.mxu0 0
    %618 = vmatpush1.bf16.msra.mxu0 %v583
    %619 = vmatprep.subr.bf16.mxu0 0
    %620 = vmatpush1.bf16.msra.mxu0 %v584
    %621 = vmatprep.subr.bf16.mxu0 0
    %622 = vmatpush1.bf16.msra.mxu0 %v585
    %623 = vmatprep.subr.bf16.mxu0 0
    %624 = vmatpush1.bf16.msra.mxu0 %v586
    %625 = vmatprep.subr.bf16.mxu0 0
    %626 = vmatpush1.bf16.msra.mxu0 %v587
    %627 = vmatprep.subr.bf16.mxu0 0
    %628 = vmatpush1.bf16.msra.mxu0 %v588
    %629 = vmatprep.subr.bf16.mxu0 0
    %630 = vmatpush1.bf16.msra.mxu0 %v589
    %631 = vmatprep.subr.bf16.mxu0 0
    %632 = vmatpush1.bf16.msra.mxu0 %v590
    %633 = vmatprep.subr.bf16.mxu0 0
    %634 = vmatpush1.bf16.msra.mxu0 %v591
    %635 = vmatprep.subr.bf16.mxu0 0
    %636 = vmatpush1.bf16.msra.mxu0 %v592
    %637 = vmatprep.subr.bf16.mxu0 0
    %638 = vmatpush1.bf16.msra.mxu0 %v593
    %639 = vmatprep.subr.bf16.mxu0 0
    %640 = vmatpush1.bf16.msra.mxu0 %v594
    %641 = vmatprep.subr.bf16.mxu0 0
    %642 = vmatpush1.bf16.msra.mxu0 %v595
    %643 = vmatprep.subr.bf16.mxu0 0
    %644 = vmatpush1.bf16.msra.mxu0 %v596
    %645 = vmatprep.mubr.bf16.mxu0 %v477
    %646 = vmatmul.mubr.bf16.gmra.mrb[0].mxu0 %v476
    %v647 = vpop.f32.mrb[0].mxu0
    %v648 = vadd.f32 %v515, %v647
    %v649 = vpop.f32.mrb[0].mxu0
    %v650 = vpop.f32.mrb[0].mxu0
    %v651 = vpop.f32.mrb[0].mxu0
    %652 = vdwg.mxu0
    %v653 = vmax.f32 %v648, 0.0
    %v654 = vpack.c.bf16 %v653, %v653
    %v655 = vld [vmem:[#allocation10] sm:$0xff]
    %v656 = vld [vmem:[#allocation10 + $0x8] sm:$0xff]
    %v657 = vld [vmem:[#allocation10 + $0x10] sm:$0xff]
    %v658 = vld [vmem:[#allocation10 + $0x18] sm:$0xff]
    %v659 = vld [vmem:[#allocation10 + $0x20] sm:$0xff]
    %v660 = vld [vmem:[#allocation10 + $0x28] sm:$0xff]
    %v661 = vld [vmem:[#allocation10 + $0x30] sm:$0xff]
    %v662 = vld [vmem:[#allocation10 + $0x38] sm:$0xff]
    %v663 = vld [vmem:[#allocation10 + $0x40] sm:$0xff]
    %v664 = vld [vmem:[#allocation10 + $0x48] sm:$0xff]
    %v665 = vld [vmem:[#allocation10 + $0x50] sm:$0xff]
    %v666 = vld [vmem:[#allocation10 + $0x58] sm:$0xff]
    %v667 = vld [vmem:[#allocation10 + $0x60] sm:$0xff]
    %v668 = vld [vmem:[#allocation10 + $0x68] sm:$0xff]
    %v669 = vld [vmem:[#allocation10 + $0x70] sm:$0xff]
    %v670 = vld [vmem:[#allocation10 + $0x78] sm:$0xff]
    %v671 = vld [vmem:[%s8] sm:$0x3]
    %v673 = vlaneseq
    %v674 = vshrl.u32 %v673, 7
    %v675 = vsub.s32 0, %v674
    %v676 = vrot.slane %v671, %v675
    %v677 = vlaneseq
    %v678 = vshrl.u32 %v677, 7
    %v679 = vsub.s32 1, %v678
    %v680 = vrot.slane %v671, %v679
    %v699 = vunpack.c.l.b16 %v655
    %v700 = vunpack.c.h.b16 %v655
    %v701 = vunpack.c.l.b16 %v656
    %v702 = vunpack.c.h.b16 %v656
    %v703 = vunpack.c.l.b16 %v657
    %v704 = vunpack.c.h.b16 %v657
    %v705 = vunpack.c.l.b16 %v658
    %v706 = vunpack.c.h.b16 %v658
    %v707 = vunpack.c.l.b16 %v659
    %v708 = vunpack.c.h.b16 %v659
    %v709 = vunpack.c.l.b16 %v660
    %v710 = vunpack.c.h.b16 %v660
    %v711 = vunpack.c.l.b16 %v661
    %v712 = vunpack.c.h.b16 %v661
    %v713 = vunpack.c.l.b16 %v662
    %v714 = vunpack.c.h.b16 %v662
    %v715 = vunpack.c.l.b16 %v663
    %v716 = vunpack.c.h.b16 %v663
    %v717 = vunpack.c.l.b16 %v664
    %v718 = vunpack.c.h.b16 %v664
    %v719 = vunpack.c.l.b16 %v665
    %v720 = vunpack.c.h.b16 %v665
    %v721 = vunpack.c.l.b16 %v666
    %v722 = vunpack.c.h.b16 %v666
    %v723 = vunpack.c.l.b16 %v667
    %v724 = vunpack.c.h.b16 %v667
    %v725 = vunpack.c.l.b16 %v668
    %v726 = vunpack.c.h.b16 %v668
    %v727 = vunpack.c.l.b16 %v669
    %v728 = vunpack.c.h.b16 %v669
    %v729 = vunpack.c.l.b16 %v670
    %v730 = vunpack.c.h.b16 %v670
    %v731 = vpack.c.b16 %v701, %v699
    %v732 = vpack.c.b16 %v702, %v700
    %v733 = vpack.c.b16 %v705, %v703
    %v734 = vpack.c.b16 %v706, %v704
    %v735 = vpack.c.b16 %v709, %v707
    %v736 = vpack.c.b16 %v710, %v708
    %v737 = vpack.c.b16 %v713, %v711
    %v738 = vpack.c.b16 %v714, %v712
    %v739 = vpack.c.b16 %v717, %v715
    %v740 = vpack.c.b16 %v718, %v716
    %v741 = vpack.c.b16 %v721, %v719
    %v742 = vpack.c.b16 %v722, %v720
    %v743 = vpack.c.b16 %v725, %v723
    %v744 = vpack.c.b16 %v726, %v724
    %v745 = vpack.c.b16 %v729, %v727
    %v746 = vpack.c.b16 %v730, %v728
    %763 = vmatprep.subr.bf16.mxu0 %v732
    %764 = vmatpush1.bf16.msra.mxu0 %v731
    %765 = vmatprep.subr.bf16.mxu0 %v734
    %766 = vmatpush1.bf16.msra.mxu0 %v733
    %767 = vmatprep.subr.bf16.mxu0 %v736
    %768 = vmatpush1.bf16.msra.mxu0 %v735
    %769 = vmatprep.subr.bf16.mxu0 %v738
    %770 = vmatpush1.bf16.msra.mxu0 %v737
    %771 = vmatprep.subr.bf16.mxu0 %v740
    %772 = vmatpush1.bf16.msra.mxu0 %v739
    %773 = vmatprep.subr.bf16.mxu0 %v742
    %774 = vmatpush1.bf16.msra.mxu0 %v741
    %775 = vmatprep.subr.bf16.mxu0 %v744
    %776 = vmatpush1.bf16.msra.mxu0 %v743
    %777 = vmatprep.subr.bf16.mxu0 %v746
    %778 = vmatpush1.bf16.msra.mxu0 %v745
    %779 = vmatprep.subr.bf16.mxu0 0
    %780 = vmatpush1.bf16.msra.mxu0 0
    %781 = vmatprep.subr.bf16.mxu0 0
    %782 = vmatpush1.bf16.msra.mxu0 0
    %783 = vmatprep.subr.bf16.mxu0 0
    %784 = vmatpush1.bf16.msra.mxu0 0
    %785 = vmatprep.subr.bf16.mxu0 0
    %786 = vmatpush1.bf16.msra.mxu0 0
    %787 = vmatprep.subr.bf16.mxu0 0
    %788 = vmatpush1.bf16.msra.mxu0 0
    %789 = vmatprep.subr.bf16.mxu0 0
    %790 = vmatpush1.bf16.msra.mxu0 0
    %791 = vmatprep.subr.bf16.mxu0 0
    %792 = vmatpush1.bf16.msra.mxu0 0
    %793 = vmatprep.subr.bf16.mxu0 0
    %794 = vmatpush1.bf16.msra.mxu0 0
    %795 = vmatprep.mubr.bf16.mxu0 0
    %796 = vmatmul.mubr.bf16.gmra.mrb[0].mxu0 %v654
    %v797 = vpop.f32.mrb[0].mxu0
    %v798 = vadd.f32 %v676, %v797
    %v799 = vpop.f32.mrb[0].mxu0
    %v800 = vadd.f32 %v680, %v799
    %v801 = vpop.f32.mrb[0].mxu0
    %v802 = vpop.f32.mrb[0].mxu0
    %803 = vdwg.mxu0
    %v804 = vmax.f32 %v798, 0.0
    %v805 = vmax.f32 %v800, 0.0
    %v806 = vpack.c.bf16 %v804, %v804
    %v807 = vpack.c.bf16 %v805, %v805
    %v808 = vld [vmem:[#allocation11] sm:$0xff]
    %v809 = vld [vmem:[#allocation11 + $0x8] sm:$0xff]
    %v810 = vld [vmem:[#allocation11 + $0x10] sm:$0xff]
    %v811 = vld [vmem:[#allocation11 + $0x18] sm:$0xff]
    %v812 = vld [vmem:[#allocation11 + $0x20] sm:$0xff]
    %v813 = vld [vmem:[#allocation11 + $0x28] sm:$0xff]
    %v814 = vld [vmem:[#allocation11 + $0x30] sm:$0xff]
    %v815 = vld [vmem:[#allocation11 + $0x38] sm:$0xff]
    %v816 = vld [vmem:[#allocation11 + $0x40] sm:$0xff]
    %v817 = vld [vmem:[#allocation11 + $0x48] sm:$0xff]
    %v818 = vld [vmem:[#allocation11 + $0x50] sm:$0xff]
    %v819 = vld [vmem:[#allocation11 + $0x58] sm:$0xff]
    %v820 = vld [vmem:[#allocation11 + $0x60] sm:$0xff]
    %v821 = vld [vmem:[#allocation11 + $0x68] sm:$0xff]
    %v822 = vld [vmem:[#allocation11 + $0x70] sm:$0xff]
    %v823 = vld [vmem:[#allocation11 + $0x78] sm:$0xff]
    %v824 = vld [vmem:[#allocation11 + $0x80] sm:$0xff]
    %v825 = vld [vmem:[#allocation11 + $0x88] sm:$0xff]
    %v826 = vld [vmem:[#allocation11 + $0x90] sm:$0xff]
    %v827 = vld [vmem:[#allocation11 + $0x98] sm:$0xff]
    %v828 = vld [vmem:[#allocation11 + $0xa0] sm:$0xff]
    %v829 = vld [vmem:[#allocation11 + $0xa8] sm:$0xff]
    %v830 = vld [vmem:[#allocation11 + $0xb0] sm:$0xff]
    %v831 = vld [vmem:[#allocation11 + $0xb8] sm:$0xff]
    %v832 = vld [vmem:[#allocation11 + $0xc0] sm:$0xff]
    %v833 = vld [vmem:[#allocation11 + $0xc8] sm:$0xff]
    %v834 = vld [vmem:[#allocation11 + $0xd0] sm:$0xff]
    %v835 = vld [vmem:[#allocation11 + $0xd8] sm:$0xff]
    %v836 = vld [vmem:[#allocation11 + $0xe0] sm:$0xff]
    %v837 = vld [vmem:[#allocation11 + $0xe8] sm:$0xff]
    %v838 = vld [vmem:[#allocation11 + $0xf0] sm:$0xff]
    %v839 = vld [vmem:[#allocation11 + $0xf8] sm:$0xff]
    %v840 = vld [vmem:[%s10] sm:$0xf]
    %v842 = vlaneseq
    %v843 = vshrl.u32 %v842, 7
    %v844 = vsub.s32 0, %v843
    %v845 = vrot.slane %v840, %v844
    %v846 = vlaneseq
    %v847 = vshrl.u32 %v846, 7
    %v848 = vsub.s32 1, %v847
    %v849 = vrot.slane %v840, %v848
    %v850 = vlaneseq
    %v851 = vshrl.u32 %v850, 7
    %v852 = vsub.s32 2, %v851
    %v853 = vrot.slane %v840, %v852
    %v854 = vlaneseq
    %v855 = vshrl.u32 %v854, 7
    %v856 = vsub.s32 3, %v855
    %v857 = vrot.slane %v840, %v856
    %v894 = vunpack.c.l.b16 %v808
    %v895 = vunpack.c.h.b16 %v808
    %v896 = vunpack.c.l.b16 %v809
    %v897 = vunpack.c.h.b16 %v809
    %v898 = vunpack.c.l.b16 %v810
    %v899 = vunpack.c.h.b16 %v810
    %v900 = vunpack.c.l.b16 %v811
    %v901 = vunpack.c.h.b16 %v811
    %v902 = vunpack.c.l.b16 %v812
    %v903 = vunpack.c.h.b16 %v812
    %v904 = vunpack.c.l.b16 %v813
    %v905 = vunpack.c.h.b16 %v813
    %v906 = vunpack.c.l.b16 %v814
    %v907 = vunpack.c.h.b16 %v814
    %v908 = vunpack.c.l.b16 %v815
    %v909 = vunpack.c.h.b16 %v815
    %v910 = vunpack.c.l.b16 %v816
    %v911 = vunpack.c.h.b16 %v816
    %v912 = vunpack.c.l.b16 %v817
    %v913 = vunpack.c.h.b16 %v817
    %v914 = vunpack.c.l.b16 %v818
    %v915 = vunpack.c.h.b16 %v818
    %v916 = vunpack.c.l.b16 %v819
    %v917 = vunpack.c.h.b16 %v819
    %v918 = vunpack.c.l.b16 %v820
    %v919 = vunpack.c.h.b16 %v820
    %v920 = vunpack.c.l.b16 %v821
    %v921 = vunpack.c.h.b16 %v821
    %v922 = vunpack.c.l.b16 %v822
    %v923 = vunpack.c.h.b16 %v822
    %v924 = vunpack.c.l.b16 %v823
    %v925 = vunpack.c.h.b16 %v823
    %v926 = vunpack.c.l.b16 %v824
    %v927 = vunpack.c.h.b16 %v824
    %v928 = vunpack.c.l.b16 %v825
    %v929 = vunpack.c.h.b16 %v825
    %v930 = vunpack.c.l.b16 %v826
    %v931 = vunpack.c.h.b16 %v826
    %v932 = vunpack.c.l.b16 %v827
    %v933 = vunpack.c.h.b16 %v827
    %v934 = vunpack.c.l.b16 %v828
    %v935 = vunpack.c.h.b16 %v828
    %v936 = vunpack.c.l.b16 %v829
    %v937 = vunpack.c.h.b16 %v829
    %v938 = vunpack.c.l.b16 %v830
    %v939 = vunpack.c.h.b16 %v830
    %v940 = vunpack.c.l.b16 %v831
    %v941 = vunpack.c.h.b16 %v831
    %v942 = vunpack.c.l.b16 %v832
    %v943 = vunpack.c.h.b16 %v832
    %v944 = vunpack.c.l.b16 %v833
    %v945 = vunpack.c.h.b16 %v833
    %v946 = vunpack.c.l.b16 %v834
    %v947 = vunpack.c.h.b16 %v834
    %v948 = vunpack.c.l.b16 %v835
    %v949 = vunpack.c.h.b16 %v835
    %v950 = vunpack.c.l.b16 %v836
    %v951 = vunpack.c.h.b16 %v836
    %v952 = vunpack.c.l.b16 %v837
    %v953 = vunpack.c.h.b16 %v837
    %v954 = vunpack.c.l.b16 %v838
    %v955 = vunpack.c.h.b16 %v838
    %v956 = vunpack.c.l.b16 %v839
    %v957 = vunpack.c.h.b16 %v839
    %v958 = vpack.c.b16 %v898, %v894
    %v959 = vpack.c.b16 %v899, %v895
    %v960 = vpack.c.b16 %v900, %v896
    %v961 = vpack.c.b16 %v901, %v897
    %v962 = vpack.c.b16 %v906, %v902
    %v963 = vpack.c.b16 %v907, %v903
    %v964 = vpack.c.b16 %v908, %v904
    %v965 = vpack.c.b16 %v909, %v905
    %v966 = vpack.c.b16 %v914, %v910
    %v967 = vpack.c.b16 %v915, %v911
    %v968 = vpack.c.b16 %v916, %v912
    %v969 = vpack.c.b16 %v917, %v913
    %v970 = vpack.c.b16 %v922, %v918
    %v971 = vpack.c.b16 %v923, %v919
    %v972 = vpack.c.b16 %v924, %v920
    %v973 = vpack.c.b16 %v925, %v921
    %v974 = vpack.c.b16 %v930, %v926
    %v975 = vpack.c.b16 %v931, %v927
    %v976 = vpack.c.b16 %v932, %v928
    %v977 = vpack.c.b16 %v933, %v929
    %v978 = vpack.c.b16 %v938, %v934
    %v979 = vpack.c.b16 %v939, %v935
    %v980 = vpack.c.b16 %v940, %v936
    %v981 = vpack.c.b16 %v941, %v937
    %v982 = vpack.c.b16 %v946, %v942
    %v983 = vpack.c.b16 %v947, %v943
    %v984 = vpack.c.b16 %v948, %v944
    %v985 = vpack.c.b16 %v949, %v945
    %v986 = vpack.c.b16 %v954, %v950
    %v987 = vpack.c.b16 %v955, %v951
    %v988 = vpack.c.b16 %v956, %v952
    %v989 = vpack.c.b16 %v957, %v953
    %1022 = vmatprep.subr.bf16.mxu0 %v959
    %1023 = vmatpush1.bf16.msra.mxu0 %v958
    %1024 = vmatprep.subr.bf16.mxu0 %v963
    %1025 = vmatpush1.bf16.msra.mxu0 %v962
    %1026 = vmatprep.subr.bf16.mxu0 %v967
    %1027 = vmatpush1.bf16.msra.mxu0 %v966
    %1028 = vmatprep.subr.bf16.mxu0 %v971
    %1029 = vmatpush1.bf16.msra.mxu0 %v970
    %1030 = vmatprep.subr.bf16.mxu0 %v975
    %1031 = vmatpush1.bf16.msra.mxu0 %v974
    %1032 = vmatprep.subr.bf16.mxu0 %v979
    %1033 = vmatpush1.bf16.msra.mxu0 %v978
    %1034 = vmatprep.subr.bf16.mxu0 %v983
    %1035 = vmatpush1.bf16.msra.mxu0 %v982
    %1036 = vmatprep.subr.bf16.mxu0 %v987
    %1037 = vmatpush1.bf16.msra.mxu0 %v986
    %1038 = vmatprep.subr.bf16.mxu0 0
    %1039 = vmatpush1.bf16.msra.mxu0 0
    %1040 = vmatprep.subr.bf16.mxu0 0
    %1041 = vmatpush1.bf16.msra.mxu0 0
    %1042 = vmatprep.subr.bf16.mxu0 0
    %1043 = vmatpush1.bf16.msra.mxu0 0
    %1044 = vmatprep.subr.bf16.mxu0 0
    %1045 = vmatpush1.bf16.msra.mxu0 0
    %1046 = vmatprep.subr.bf16.mxu0 0
    %1047 = vmatpush1.bf16.msra.mxu0 0
    %1048 = vmatprep.subr.bf16.mxu0 0
    %1049 = vmatpush1.bf16.msra.mxu0 0
    %1050 = vmatprep.subr.bf16.mxu0 0
    %1051 = vmatpush1.bf16.msra.mxu0 0
    %1052 = vmatprep.subr.bf16.mxu0 0
    %1053 = vmatpush1.bf16.msra.mxu0 0
    %1054 = vmatprep.mubr.bf16.mxu0 0
    %1055 = vmatmul.mubr.bf16.gmra.mrb[0].mxu0 %v806
    %v1056 = vpop.f32.mrb[0].mxu0
    %v1057 = vadd.f32 %v845, %v1056
    %v1058 = vpop.f32.mrb[0].mxu0
    %v1059 = vadd.f32 %v849, %v1058
    %v1060 = vpop.f32.mrb[0].mxu0
    %v1061 = vpop.f32.mrb[0].mxu0
    %1062 = vdwg.mxu0
    %1063 = vmatprep.subr.bf16.mxu0 %v961
    %1064 = vmatpush1.bf16.msra.mxu0 %v960
    %1065 = vmatprep.subr.bf16.mxu0 %v965
    %1066 = vmatpush1.bf16.msra.mxu0 %v964
    %1067 = vmatprep.subr.bf16.mxu0 %v969
    %1068 = vmatpush1.bf16.msra.mxu0 %v968
    %1069 = vmatprep.subr.bf16.mxu0 %v973
    %1070 = vmatpush1.bf16.msra.mxu0 %v972
    %1071 = vmatprep.subr.bf16.mxu0 %v977
    %1072 = vmatpush1.bf16.msra.mxu0 %v976
    %1073 = vmatprep.subr.bf16.mxu0 %v981
    %1074 = vmatpush1.bf16.msra.mxu0 %v980
    %1075 = vmatprep.subr.bf16.mxu0 %v985
    %1076 = vmatpush1.bf16.msra.mxu0 %v984
    %1077 = vmatprep.subr.bf16.mxu0 %v989
    %1078 = vmatpush1.bf16.msra.mxu0 %v988
    %1079 = vmatprep.subr.bf16.mxu0 0
    %1080 = vmatpush1.bf16.msra.mxu0 0
    %1081 = vmatprep.subr.bf16.mxu0 0
    %1082 = vmatpush1.bf16.msra.mxu0 0
    %1083 = vmatprep.subr.bf16.mxu0 0
    %1084 = vmatpush1.bf16.msra.mxu0 0
    %1085 = vmatprep.subr.bf16.mxu0 0
    %1086 = vmatpush1.bf16.msra.mxu0 0
    %1087 = vmatprep.subr.bf16.mxu0 0
    %1088 = vmatpush1.bf16.msra.mxu0 0
    %1089 = vmatprep.subr.bf16.mxu0 0
    %1090 = vmatpush1.bf16.msra.mxu0 0
    %1091 = vmatprep.subr.bf16.mxu0 0
    %1092 = vmatpush1.bf16.msra.mxu0 0
    %1093 = vmatprep.subr.bf16.mxu0 0
    %1094 = vmatpush1.bf16.msra.mxu0 0
    %1095 = vmatprep.mubr.bf16.mxu0 0
    %1096 = vmatmul.mubr.bf16.gmra.mrb[0].mxu0 %v806
    %v1097 = vpop.f32.mrb[0].mxu0
    %v1098 = vadd.f32 %v853, %v1097
    %v1099 = vpop.f32.mrb[0].mxu0
    %v1100 = vadd.f32 %v857, %v1099
    %v1101 = vpop.f32.mrb[0].mxu0
    %v1102 = vpop.f32.mrb[0].mxu0
    %1103 = vdwg.mxu0
    %v1104 = vld [vmem:[#allocation13] sm:$0xf]
    %v1105 = vld [vmem:[#allocation13 + $0x4] sm:$0xf]
    %v1106 = vld [vmem:[#allocation13 + $0x8] sm:$0xf]
    %v1107 = vld [vmem:[#allocation13 + $0xc] sm:$0xf]
    %v1108 = vld [vmem:[#allocation13 + $0x10] sm:$0xf]
    %v1109 = vld [vmem:[#allocation13 + $0x14] sm:$0xf]
    %v1110 = vld [vmem:[#allocation13 + $0x18] sm:$0xf]
    %v1111 = vld [vmem:[#allocation13 + $0x1c] sm:$0xf]
    %v1112 = vld [vmem:[#allocation13 + $0x20] sm:$0xf]
    %v1113 = vld [vmem:[#allocation13 + $0x24] sm:$0xf]
    %v1114 = vld [vmem:[#allocation13 + $0x28] sm:$0xf]
    %v1115 = vld [vmem:[#allocation13 + $0x2c] sm:$0xf]
    %v1116 = vld [vmem:[#allocation13 + $0x30] sm:$0xf]
    %v1117 = vld [vmem:[#allocation13 + $0x34] sm:$0xf]
    %v1118 = vld [vmem:[#allocation13 + $0x38] sm:$0xf]
    %v1119 = vld [vmem:[#allocation13 + $0x3c] sm:$0xf]
    %v1120 = vld [vmem:[%s12] sm:$0x1]
    %v1122 = vlaneseq
    %v1123 = vshrl.u32 %v1122, 7
    %v1124 = vsub.s32 0, %v1123
    %v1125 = vrot.slane %v1120, %v1124
    %v1143 = vunpack.c.l.b16 %v1104
    %v1144 = vunpack.c.l.b16 %v1105
    %v1145 = vunpack.c.l.b16 %v1106
    %v1146 = vunpack.c.l.b16 %v1107
    %v1147 = vunpack.c.l.b16 %v1108
    %v1148 = vunpack.c.l.b16 %v1109
    %v1149 = vunpack.c.l.b16 %v1110
    %v1150 = vunpack.c.l.b16 %v1111
    %v1151 = vunpack.c.l.b16 %v1112
    %v1152 = vunpack.c.l.b16 %v1113
    %v1153 = vunpack.c.l.b16 %v1114
    %v1154 = vunpack.c.l.b16 %v1115
    %v1155 = vunpack.c.l.b16 %v1116
    %v1156 = vunpack.c.l.b16 %v1117
    %v1157 = vunpack.c.l.b16 %v1118
    %v1158 = vunpack.c.l.b16 %v1119
    %v1159 = vpack.c.b16 %v1144, %v1143
    %v1160 = vpack.c.b16 %v1146, %v1145
    %v1161 = vpack.c.b16 %v1148, %v1147
    %v1162 = vpack.c.b16 %v1150, %v1149
    %v1163 = vpack.c.b16 %v1152, %v1151
    %v1164 = vpack.c.b16 %v1154, %v1153
    %v1165 = vpack.c.b16 %v1156, %v1155
    %v1166 = vpack.c.b16 %v1158, %v1157
    %1175 = vmatprep.subr.bf16.mxu0 0
    %1176 = vmatpush1.bf16.msra.mxu0 %v1159
    %1177 = vmatprep.subr.bf16.mxu0 0
    %1178 = vmatpush1.bf16.msra.mxu0 %v1160
    %1179 = vmatprep.subr.bf16.mxu0 0
    %1180 = vmatpush1.bf16.msra.mxu0 %v1161
    %1181 = vmatprep.subr.bf16.mxu0 0
    %1182 = vmatpush1.bf16.msra.mxu0 %v1162
    %1183 = vmatprep.subr.bf16.mxu0 0
    %1184 = vmatpush1.bf16.msra.mxu0 %v1163
    %1185 = vmatprep.subr.bf16.mxu0 0
    %1186 = vmatpush1.bf16.msra.mxu0 %v1164
    %1187 = vmatprep.subr.bf16.mxu0 0
    %1188 = vmatpush1.bf16.msra.mxu0 %v1165
    %1189 = vmatprep.subr.bf16.mxu0 0
    %1190 = vmatpush1.bf16.msra.mxu0 %v1166
    %1191 = vmatprep.subr.bf16.mxu0 0
    %1192 = vmatpush1.bf16.msra.mxu0 0
    %1193 = vmatprep.subr.bf16.mxu0 0
    %1194 = vmatpush1.bf16.msra.mxu0 0
    %1195 = vmatprep.subr.bf16.mxu0 0
    %1196 = vmatpush1.bf16.msra.mxu0 0
    %1197 = vmatprep.subr.bf16.mxu0 0
    %1198 = vmatpush1.bf16.msra.mxu0 0
    %1199 = vmatprep.subr.bf16.mxu0 0
    %1200 = vmatpush1.bf16.msra.mxu0 0
    %1201 = vmatprep.subr.bf16.mxu0 0
    %1202 = vmatpush1.bf16.msra.mxu0 0
    %1203 = vmatprep.subr.bf16.mxu0 0
    %1204 = vmatpush1.bf16.msra.mxu0 0
    %1205 = vmatprep.subr.bf16.mxu0 0
    %1206 = vmatpush1.bf16.msra.mxu0 0
    %1207 = vmatprep.mubr.bf16.mxu0 0
    %1208 = vmatmul.mubr.bf16.gmra.mrb[0].mxu0 %v807
    %v1209 = vpop.f32.mrb[0].mxu0
    %v1210 = vadd.f32 %v1125, %v1209
    %v1211 = vpop.f32.mrb[0].mxu0
    %v1212 = vpop.f32.mrb[0].mxu0
    %v1213 = vpop.f32.mrb[0].mxu0
    %1214 = vdwg.mxu0
    %v1215 = vadd.f32 %v1057, %v1059
    %v1216 = vadd.f32 %v1215, %v1098
    %v1217 = vadd.f32 %v1216, %v1100
    %v1218 = vmul.f32 %v1217, 0.25
    %v1219 = vld [vmem:[%s13] sm:$0x1]
    %v1220 = vlaneseq
    %v1221 = vand.u32 %v1220, 127
    %v1222 = vadd.f32 %v1210, %v1057
    %v1223 = vsub.f32 %v1222, %v1218
    %1224 = vmax.xlane.f32.xlu0 %v1223
    %v1225 = vpop.xlane.xlu0 %1224
    %v1226 = vsub.f32 %v1223, %v1225
    %v1227 = vmul.f32 %v1226, 1.442695
    %v1228 = vpow.pop %v1227
    %1229 = vadd.xlane.f32.xlu0 %v1228
    %v1230 = vpop.xlane.xlu0 %1229
    %v1231 = vrcp.pop %v1230
    %v1232 = vmul.f32 %v1228, %v1231
    %v1233 = vmax.f32 %v1232, 0.001
    %v1235 = vlaneseq
    %v1236 = vshrl.u32 %v1235, 7
    %v1237 = vsub.s32 0, %v1236
    %v1238 = vrot.slane %v1219, %v1237
    %v1240 = vmul.f32 %v1233, %v1238
    %1241 = vadd.xlane.f32.xlu0 %v1240
    %v1242 = vpop.xlane.xlu0 %1241
    %vm1243 = vcmp.eq.s32.totalorder %v1221, 0
    %v1244 = vsel %vm1243, %v1242, 0.0
    %v1245 = vadd.f32 %v1210, %v1059
    %v1246 = vsub.f32 %v1245, %v1218
    %1247 = vmax.xlane.f32.xlu0 %v1246
    %v1248 = vpop.xlane.xlu0 %1247
    %v1249 = vsub.f32 %v1246, %v1248
    %v1250 = vmul.f32 %v1249, 1.442695
    %v1251 = vpow.pop %v1250
    %1252 = vadd.xlane.f32.xlu0 %v1251
    %v1253 = vpop.xlane.xlu0 %1252
    %v1254 = vrcp.pop %v1253
    %v1255 = vmul.f32 %v1251, %v1254
    %v1256 = vmax.f32 %v1255, 0.001
    %v1257 = vmul.f32 %v1256, %v1238
    %1258 = vadd.xlane.f32.xlu0 %v1257
    %v1259 = vpop.xlane.xlu0 %1258
    %vm1260 = vcmp.eq.s32.totalorder %v1221, 1
    %v1261 = vsel %vm1260, %v1259, %v1244
    %v1262 = vadd.f32 %v1210, %v1098
    %v1263 = vsub.f32 %v1262, %v1218
    %1264 = vmax.xlane.f32.xlu0 %v1263
    %v1265 = vpop.xlane.xlu0 %1264
    %v1266 = vsub.f32 %v1263, %v1265
    %v1267 = vmul.f32 %v1266, 1.442695
    %v1268 = vpow.pop %v1267
    %1269 = vadd.xlane.f32.xlu0 %v1268
    %v1270 = vpop.xlane.xlu0 %1269
    %v1271 = vrcp.pop %v1270
    %v1272 = vmul.f32 %v1268, %v1271
    %v1273 = vmax.f32 %v1272, 0.001
    %v1274 = vmul.f32 %v1273, %v1238
    %1275 = vadd.xlane.f32.xlu0 %v1274
    %v1276 = vpop.xlane.xlu0 %1275
    %vm1277 = vcmp.eq.s32.totalorder %v1221, 2
    %v1278 = vsel %vm1277, %v1276, %v1261
    %v1279 = vadd.f32 %v1210, %v1100
    %v1280 = vsub.f32 %v1279, %v1218
    %1281 = vmax.xlane.f32.xlu0 %v1280
    %v1282 = vpop.xlane.xlu0 %1281
    %v1283 = vsub.f32 %v1280, %v1282
    %v1284 = vmul.f32 %v1283, 1.442695
    %v1285 = vpow.pop %v1284
    %1286 = vadd.xlane.f32.xlu0 %v1285
    %v1287 = vpop.xlane.xlu0 %1286
    %v1288 = vrcp.pop %v1287
    %v1289 = vmul.f32 %v1285, %v1288
    %v1290 = vmax.f32 %v1289, 0.001
    %v1291 = vmul.f32 %v1290, %v1238
    %1292 = vadd.xlane.f32.xlu0 %v1291
    %v1293 = vpop.xlane.xlu0 %1292
    %vm1294 = vcmp.eq.s32.totalorder %v1221, 3
    %v1295 = vsel %vm1294, %v1293, %v1278
    %1296 = vst [vmem:[#allocation14] sm:$0xff] %v1295
    // Predicated region
    $region86: #{tpu_custom_call.1} parent=1 // pred_check
      _
    $region87: #{tpu_custom_call.1} parent=1 // pred_check_branch
      %1298 = sbr.rel (0) target = $region89
    $region88: #{tpu_custom_call.1} parent=1 // pred_region
      %s1300 = ssub.s32 128, 128
      %1301 = vsyncadd [#allocation4], %s1300
      %s1303 = sshll.u32 [#allocation14], 4
      %s1304 = int_to_ptr.vmem [resolvable:$true] %s1303
      %1306 = dma.vmem_to_hbm [thread:$0]  %s1304, 128, %s14, [#allocation4]
    $region89: #{tpu_custom_call.1} parent=1 // pred_fallthru
      _
    // Predicated region
    $region90: #{tpu_custom_call.1} parent=1 // pred_check
      _
    $region91: #{tpu_custom_call.1} parent=1 // pred_check_branch
      %1308 = sbr.rel (0) target = $region93
    $region92: #{tpu_custom_call.1} parent=1 // pred_region
      %1309 = dma.done [#allocation4], 128
    $region93: #{tpu_custom_call.1} parent=1 // pred_fallthru
      _
    %1310 = vsyncpa [#allocation3], 1
    %1311 = vsyncpa [#allocation6], 1
    %1312 = vsyncpa [#allocation9], 1
    %1313 = vsyncpa [#allocation12], 1
    %1314 = vsyncpa [#allocation4], 1

</llo_original>
